<compile_context>
chip_gen: v6e
topology: v6e:2x2x1
jax: 0.10.0
libtpu: 0.0.40
codegen_flags: <defaults>
</compile_context>

<pallas_src>
import functools

import jax
import jax.numpy as jnp
from jax.experimental import pallas as pl
from jax.experimental.pallas import tpu as pltpu

NEG_INF = -1e30          # finite "minus infinity" keeps exp/log NaN-free on TPU
S_PAD = 128              # padded extended (blank-interleaved) label axis = one vreg row
LMAX = (S_PAD - 1) // 2  # max supported labels per example (63)


def _ctc_kernel(acts_ref, ext_ref, skip_ref, act_lens_ref, lab_lens_ref,
                cost_ref, alpha_ref, onehot_ref):
    # acts_ref:     (Bt, Tt, V) f32  raw activations for this (batch, time) tile
    # ext_ref:      (Bt, S_PAD, 1) i32 blank-interleaved label ids (unit lane dim -> cheap splat)
    # skip_ref:     (Bt, S_PAD) i32  1 where the s-2 "skip" transition is allowed
    # act_lens_ref: (Bt, 1) i32
    # lab_lens_ref: (Bt, 1) i32
    # cost_ref:     (Bt, 1) f32  per-example NLL, written on the last time block
    # alpha_ref:    (Bt, S_PAD) f32 scratch: alpha DP row carried across time blocks
    # onehot_ref:   (Bt, S_PAD, V) f32 scratch: gather matrix, built once per batch block
    Bt, Tt, V = acts_ref.shape
    S = alpha_ref.shape[1]
    t_idx = pl.program_id(1)
    nt = pl.num_programs(1)

    s_idx = jax.lax.broadcasted_iota(jnp.int32, (Bt, S), 1)

    # Build the one-hot gather matrix once per batch block (no dense one-hot from HBM).
    @pl.when(t_idx == 0)
    def _build_onehot():
        v_iota = jax.lax.broadcasted_iota(jnp.int32, (Bt, S, V), 2)
        onehot_ref[...] = (ext_ref[...] == v_iota).astype(onehot_ref.dtype)

    # Gather extended-label logits with one MXU matmul on RAW activations, then apply the
    # deferred log-softmax normalizer per (b, t) (each one-hot row sums to exactly 1).
    # NOTE: casting both einsum operands to bf16 is a v6e/v7x perf knob (~1e-3 rel. loss change).
    acts = acts_ref[...]                                                       # (Bt, Tt, V)
    m = jnp.max(acts, axis=-1, keepdims=True)
    corr = m + jnp.log(jnp.sum(jnp.exp(acts - m), axis=-1, keepdims=True))     # (Bt, Tt, 1)
    acts_ext = jnp.einsum('btv,bsv->bts', acts, onehot_ref[...],
                          preferred_element_type=jnp.float32)                  # (Bt, Tt, S)
    logp_ext = acts_ext - corr                                                 # (Bt, Tt, S)

    # alpha at global frame 0: only states 0 (blank) and 1 (first label) are reachable.
    @pl.when(t_idx == 0)
    def _init_alpha():
        alpha_ref[...] = jnp.where(s_idx < 2, logp_ext[:, 0, :], NEG_INF)

    # Loop-invariant transition masks, hoisted out of the serial recurrence.
    act_lens = act_lens_ref[...]                                               # (Bt, 1)
    mask1 = s_idx >= 1
    mask2 = skip_ref[...] > 0
    neg = jnp.full((Bt, S), NEG_INF, jnp.float32)

    t0 = t_idx * Tt
    alpha = alpha_ref[...]
    # Fully unrolled recurrence over this time block (Tt is small and static); the per-frame
    # label slice is a static index, hoistable out of the exp/log dependency chain.
    for r in range(Tt):
        t_glob = t0 + r
        sh1 = jnp.where(mask1, pltpu.roll(alpha, shift=1, axis=1), neg)
        sh2 = jnp.where(mask2, pltpu.roll(alpha, shift=2, axis=1), neg)
        mx = jnp.maximum(alpha, jnp.maximum(sh1, sh2))
        lse = mx + jnp.log(jnp.exp(alpha - mx) + jnp.exp(sh1 - mx) + jnp.exp(sh2 - mx))
        new_alpha = jnp.maximum(lse + logp_ext[:, r, :], NEG_INF)
        upd = t_glob < act_lens                       # frames >= act_len carry alpha unchanged
        if r == 0:
            upd = jnp.logical_and(t_glob >= 1, upd)   # global frame 0 only initializes
        alpha = jnp.where(upd, new_alpha, alpha)
    alpha_ref[...] = alpha

    # loss_b = -logsumexp(alpha[2*L_b], alpha[2*L_b - 1])
    @pl.when(t_idx == nt - 1)
    def _finalize():
        last = 2 * lab_lens_ref[...]                                           # (Bt, 1)
        a_last = jnp.max(jnp.where(s_idx == last, alpha, neg), axis=1, keepdims=True)
        a_prev = jnp.max(jnp.where(s_idx == last - 1, alpha, neg), axis=1, keepdims=True)
        mx2 = jnp.maximum(a_last, a_prev)
        loglik = mx2 + jnp.log(jnp.exp(a_last - mx2) + jnp.exp(a_prev - mx2))  # (Bt, 1)
        cost_ref[...] = -loglik


def _extended_labels(labels, label_lens, batch):
    """Plain-JAX glue (tiny arrays): blank-interleaved label ids and the s-2 skip mask."""
    label_lens = label_lens.astype(jnp.int32)
    labels = labels.astype(jnp.int32)
    offsets = jnp.concatenate([jnp.zeros((1,), jnp.int32), jnp.cumsum(label_lens)[:-1]])
    l_idx = jnp.arange(LMAX, dtype=jnp.int32)[None, :]
    valid = l_idx < label_lens[:, None]
    gidx = jnp.clip(jnp.where(valid, offsets[:, None] + l_idx, 0),
                    0, max(labels.shape[0] - 1, 0))
    padded = jnp.where(valid, labels[gidx], 0)                                  # (B, LMAX)
    ext = jnp.zeros((batch, S_PAD), jnp.int32)
    ext = ext.at[:, 1:2 * LMAX + 1:2].set(padded)                               # labels at odd s
    s_idx = jnp.arange(S_PAD, dtype=jnp.int32)[None, :]
    ext_m2 = jnp.pad(ext, ((0, 0), (2, 0)))[:, :S_PAD]
    skip = ((s_idx >= 2) & (ext != 0) & (ext != ext_m2)).astype(jnp.int32)
    return ext, skip


def _auto_time_block(T, Bt, V):
    # ~2 MiB f32 activation tiles, MXU-friendly M dim, multiple of 8 sublanes.
    budget = 2 * 1024 * 1024
    tt = budget // max(1, Bt * V * 4)
    tt = max(8, min(128, tt, T))
    return int((tt + 7) // 8 * 8)


@functools.partial(jax.jit, static_argnames=("size_average", "length_average",
                                             "time_block", "batch_block"))
def _ctc_loss_fwd(acts, labels, act_lens, label_lens,
                  size_average, length_average, time_block, batch_block):
    T, B, V = acts.shape
    acts = acts.astype(jnp.float32)
    act_lens = act_lens.astype(jnp.int32)
    label_lens = label_lens.astype(jnp.int32)

    ext, skip = _extended_labels(labels, label_lens, B)

    # Batch tile: sublane-friendly multiple of 8 when it divides B, else the whole batch.
    Bt = batch_block if batch_block is not None else (8 if (B > 8 and B % 8 == 0) else B)
    assert B % Bt == 0, "batch_block must divide the batch size"
    nb = B // Bt

    Tt = time_block if time_block is not None else _auto_time_block(T, Bt, V)
    Tt = int(max(8, (Tt + 7) // 8 * 8))
    T_pad = ((T + Tt - 1) // Tt) * Tt
    nt = T_pad // Tt

    acts_btv = jnp.transpose(acts, (1, 0, 2))                                   # (B, T, V)
    if T_pad != T:
        # zero padding is safe: padded frames satisfy t >= act_len and are carried unchanged
        acts_btv = jnp.pad(acts_btv, ((0, 0), (0, T_pad - T), (0, 0)))

    # Explicit VMEM budget (v7x scoped default is 32 MiB; keep headroom, cap at 64 MiB).
    vmem_bytes = (2 * Bt * Tt * V * 4           # double-buffered activation tiles
                  + Bt * S_PAD * V * 4          # one-hot scratch
                  + 3 * Bt * Tt * S_PAD * 4     # gathered logits + temporaries
                  + Bt * S_PAD * 32
                  + (4 << 20))                  # headroom
    vmem_limit = int(min(max(vmem_bytes, 8 << 20), 64 << 20))

    grid_spec = pltpu.PrefetchScalarGridSpec(
        num_scalar_prefetch=0,
        grid=(nb, nt),
        in_specs=[
            pl.BlockSpec((Bt, Tt, V), lambda b, t: (b, t, 0)),       # acts tile (streamed)
            pl.BlockSpec((Bt, S_PAD, 1), lambda b, t: (b, 0, 0)),    # extended label ids
            pl.BlockSpec((Bt, S_PAD), lambda b, t: (b, 0)),          # skip-transition mask
            pl.BlockSpec((Bt, 1), lambda b, t: (b, 0)),              # act_lens
            pl.BlockSpec((Bt, 1), lambda b, t: (b, 0)),              # label_lens
        ],
        out_specs=pl.BlockSpec((Bt, 1), lambda b, t: (b, 0)),
        scratch_shapes=[pltpu.VMEM((Bt, S_PAD), jnp.float32),        # alpha carry
                        pltpu.VMEM((Bt, S_PAD, V), jnp.float32)],    # one-hot gather matrix
    )
    per_example = pl.pallas_call(
        _ctc_kernel,
        out_shape=jax.ShapeDtypeStruct((B, 1), jnp.float32),
        grid_spec=grid_spec,
        compiler_params=pltpu.CompilerParams(
            dimension_semantics=("parallel", "arbitrary"),
            vmem_limit_bytes=vmem_limit),
    )(acts_btv, ext[:, :, None], skip,
      act_lens.reshape(B, 1), label_lens.reshape(B, 1))

    total = jnp.sum(per_example)
    if length_average:
        total = total / jnp.sum(act_lens).astype(jnp.float32)
    elif size_average:
        total = total / jnp.float32(B)
    return total.reshape(1)


class CTCLossPallas:
    """Forward-only Pallas port of warpctc_pytorch.CTCLoss (blank index = 0)."""

    def __init__(self, size_average=False, length_average=False,
                 time_block=None, batch_block=None):
        self.size_average = size_average
        self.length_average = length_average
        self.time_block = time_block
        self.batch_block = batch_block

    def __call__(self, acts, labels, act_lens, label_lens):
        if labels.ndim != 1:
            raise RuntimeError("labels must be one dimensional (concatenated batch labels)")
        # NOTE: sum(label_lens) == len(labels) and max(label_lens) <= 63 are not checked here:
        # that would force a device->host sync on every call (see perf review).
        return _ctc_loss_fwd(acts, labels, act_lens, label_lens,
                             self.size_average, self.length_average,
                             self.time_block, self.batch_block)


def _ctc_reference(acts, labels, act_lens, label_lens):
    """Pure-JAX log-space CTC forward with identical semantics (verification only)."""
    T, B, V = acts.shape
    acts = acts.astype(jnp.float32)
    act_lens = act_lens.astype(jnp.int32)
    label_lens = label_lens.astype(jnp.int32)
    ext, skip = _extended_labels(labels, label_lens, B)
    logp = jax.nn.log_softmax(acts, axis=-1)                                    # (T, B, V)
    lp_ext = jnp.take_along_axis(logp, jnp.broadcast_to(ext[None], (T, B, S_PAD)), axis=2)
    s_idx = jnp.arange(S_PAD, dtype=jnp.int32)[None, :]
    alpha = jnp.where(s_idx < 2, lp_ext[0], NEG_INF)

    def step(alpha, t):
        sh1 = jnp.where(s_idx >= 1, jnp.roll(alpha, 1, axis=1), NEG_INF)
        sh2 = jnp.where(skip > 0, jnp.roll(alpha, 2, axis=1), NEG_INF)
        mx = jnp.maximum(alpha, jnp.maximum(sh1, sh2))
        lse = mx + jnp.log(jnp.exp(alpha - mx) + jnp.exp(sh1 - mx) + jnp.exp(sh2 - mx))
        new = jnp.maximum(lse + lp_ext[t], NEG_INF)
        return jnp.where(t < act_lens[:, None], new, alpha), None

    alpha, _ = jax.lax.scan(step, alpha, jnp.arange(1, T))
    last = 2 * label_lens[:, None]
    a_last = jnp.max(jnp.where(s_idx == last, alpha, NEG_INF), axis=1)
    a_prev = jnp.max(jnp.where(s_idx == last - 1, alpha, NEG_INF), axis=1)
    mx = jnp.maximum(a_last, a_prev)
    loglik = mx + jnp.log(jnp.exp(a_last - mx) + jnp.exp(a_prev - mx))
    return jnp.sum(-loglik).reshape(1)


if __name__ == "__main__":
    key = jax.random.PRNGKey(0)
    T, B, V = 32, 4, 32                      # seqLength, minibatch, outputDim (blank = 0)
    label_lens_list = [5, 3, 4, 2]
    act_lens_list = [32, 27, 20, 30]
    total_labels = sum(label_lens_list)

    k_act, k_lab = jax.random.split(key)
    acts = jax.random.normal(k_act, (T, B, V), dtype=jnp.float32)
    labels = jax.random.randint(k_lab, (total_labels,), 1, V, dtype=jnp.int32)
    act_lens = jnp.array(act_lens_list, dtype=jnp.int32)
    label_lens = jnp.array(label_lens_list, dtype=jnp.int32)

    # time_block=8 exercises the alpha-carry across 4 time-grid steps.
    ctc = CTCLossPallas(size_average=False, length_average=False, time_block=8)
    cost = ctc(acts, labels, act_lens, label_lens)
    jax.block_until_ready(cost)

    ref = _ctc_reference(acts, labels, act_lens, label_lens)
    err = float(jnp.abs(cost - ref)[0])
    tol = 1e-3 * float(jnp.abs(ref)[0]) + 1e-3
    assert err <= tol, f"mismatch: pallas={float(cost[0])} ref={float(ref[0])} err={err}"
    print("KERNEL_OK")
</pallas_src>

<mosaic_0001>
module attributes {stable_mosaic.version = 11 : i64} {
  func.func @_ctc_kernel(%arg0: i32, %arg1: i32, %arg2: memref<4x8x32xf32, #tpu.memory_space<vmem>>, %arg3: memref<4x128x1xi32, #tpu.memory_space<vmem>>, %arg4: memref<4x128xi32, #tpu.memory_space<vmem>>, %arg5: memref<4x1xi32, #tpu.memory_space<vmem>>, %arg6: memref<4x1xi32, #tpu.memory_space<vmem>>, %arg7: memref<4x1xf32, #tpu.memory_space<vmem>>, %arg8: memref<4x128xf32, #tpu.memory_space<vmem>>, %arg9: memref<4x128x32xf32, #tpu.memory_space<vmem>>) attributes {dimension_semantics = [#tpu.dimension_semantics<parallel>, #tpu.dimension_semantics<arbitrary>], iteration_bounds = array<i64: 1, 4>, scalar_prefetch = 0 : i64, scratch_operands = 2 : i64, tpu.core_type = #tpu.core_type<tc>, window_params = [{transform_indices = @transform_0, window_bounds = array<i64: 4, 8, 32>}, {transform_indices = @transform_1, window_bounds = array<i64: 4, 128, 1>}, {transform_indices = @transform_2, window_bounds = array<i64: 4, 128>}, {transform_indices = @transform_3, window_bounds = array<i64: 4, 1>}, {transform_indices = @transform_4, window_bounds = array<i64: 4, 1>}, {transform_indices = @transform_5, window_bounds = array<i64: 4, 1>}]} {
    %0 = tpu.iota {dimensions = array<i32: 1>} : vector<4x128xi32>
    %c0_i32 = arith.constant 0 : i32
    %1 = arith.cmpi eq, %arg1, %c0_i32 : i32
    %2 = arith.extui %1 : i1 to i32
    %c0_i32_0 = arith.constant 0 : i32
    %3 = arith.cmpi ne, %2, %c0_i32_0 : i32
    scf.if %3 {
      %253 = tpu.iota {dimensions = array<i32: 2>} : vector<4x128x32xi32>
      %c0_49 = arith.constant 0 : index
      %c0_50 = arith.constant 0 : index
      %c0_51 = arith.constant 0 : index
      %254 = vector.load %arg3[%c0_49, %c0_50, %c0_51] : memref<4x128x1xi32, #tpu.memory_space<vmem>>, vector<4x128x1xi32>
      %255 = vector.broadcast %254 : vector<4x128x1xi32> to vector<4x128x32xi32>
      %256 = arith.cmpi eq, %255, %253 : vector<4x128x32xi32>
      %257 = arith.extui %256 : vector<4x128x32xi1> to vector<4x128x32xi32>
      %258 = arith.sitofp %257 : vector<4x128x32xi32> to vector<4x128x32xf32>
      %c0_52 = arith.constant 0 : index
      %c0_53 = arith.constant 0 : index
      %c0_54 = arith.constant 0 : index
      %259 = vector.load %arg9[%c0_52, %c0_53, %c0_54] : memref<4x128x32xf32, #tpu.memory_space<vmem>>, vector<4x128x32xf32>
      tpu.vector_store %arg9[%c0_52, %c0_53, %c0_54], %258 {strides = array<i32>} : memref<4x128x32xf32, #tpu.memory_space<vmem>>, vector<4x128x32xf32>,
    } else {
    }
    %c0 = arith.constant 0 : index
    %c0_1 = arith.constant 0 : index
    %c0_2 = arith.constant 0 : index
    %4 = vector.load %arg2[%c0, %c0_1, %c0_2] : memref<4x8x32xf32, #tpu.memory_space<vmem>>, vector<4x8x32xf32>
    %cst = arith.constant dense<0xFF800000> : vector<4x8xf32>
    %5 = vector.multi_reduction <maximumf>, %4, %cst [2] : vector<4x8x32xf32> to vector<4x8xf32>
    %6 = vector.shape_cast %5 : vector<4x8xf32> to vector<4x8x1xf32>
    %7 = vector.broadcast %6 : vector<4x8x1xf32> to vector<4x8x32xf32>
    %8 = arith.subf %4, %7 : vector<4x8x32xf32>
    %9 = math.exp %8 : vector<4x8x32xf32>
    %cst_3 = arith.constant dense<0.000000e+00> : vector<4x8xf32>
    %10 = vector.multi_reduction <add>, %9, %cst_3 [2] : vector<4x8x32xf32> to vector<4x8xf32>
    %11 = vector.shape_cast %10 : vector<4x8xf32> to vector<4x8x1xf32>
    %12 = math.log %11 : vector<4x8x1xf32>
    %13 = arith.addf %6, %12 : vector<4x8x1xf32>
    %c0_4 = arith.constant 0 : index
    %c0_5 = arith.constant 0 : index
    %c0_6 = arith.constant 0 : index
    %14 = vector.load %arg9[%c0_4, %c0_5, %c0_6] : memref<4x128x32xf32, #tpu.memory_space<vmem>>, vector<4x128x32xf32>
    "tpu.trace_start"() <{level = 10 : i32, message = "btv,bsv->bts"}> : () -> ()
    %cst_7 = arith.constant dense<0.000000e+00> : vector<4x8x128xf32>
    %15 = tpu.matmul %4, %14, %cst_7 {dimension_numbers = #tpu.dot_dimension_numbers<[2], [2], [1], [1], [0, 0, 0, 1, 1, 1], [0], [0]>} : vector<4x8x32xf32>, vector<4x128x32xf32>, vector<4x8x128xf32> -> vector<4x8x128xf32>
    "tpu.trace_stop"() : () -> ()
    %16 = vector.broadcast %13 : vector<4x8x1xf32> to vector<4x8x128xf32>
    %17 = arith.subf %15, %16 : vector<4x8x128xf32>
    %c0_i32_8 = arith.constant 0 : i32
    %18 = arith.cmpi eq, %arg1, %c0_i32_8 : i32
    %19 = arith.extui %18 : i1 to i32
    %c0_i32_9 = arith.constant 0 : i32
    %20 = arith.cmpi ne, %19, %c0_i32_9 : i32
    scf.if %20 {
      %c2_i32_49 = arith.constant 2 : i32
      %253 = vector.broadcast %c2_i32_49 : i32 to vector<4x128xi32>
      %254 = arith.cmpi slt, %0, %253 : vector<4x128xi32>
      %255 = vector.extract_strided_slice %17 {offsets = [0, 0, 0], sizes = [4, 1, 128], strides = [1, 1, 1]} : vector<4x8x128xf32> to vector<4x1x128xf32>
      %256 = vector.shape_cast %255 : vector<4x1x128xf32> to vector<4x128xf32>
      %cst_50 = arith.constant -1.000000e+30 : f32
      %257 = vector.broadcast %cst_50 : f32 to vector<4x128xf32>
      %258 = arith.select %254, %256, %257 : vector<4x128xi1>, vector<4x128xf32>
      %c0_51 = arith.constant 0 : index
      %c0_52 = arith.constant 0 : index
      %259 = vector.load %arg8[%c0_51, %c0_52] : memref<4x128xf32, #tpu.memory_space<vmem>>, vector<4x128xf32>
      tpu.vector_store %arg8[%c0_51, %c0_52], %258 {strides = array<i32>} : memref<4x128xf32, #tpu.memory_space<vmem>>, vector<4x128xf32>,
    } else {
    }
    %c0_10 = arith.constant 0 : index
    %c0_11 = arith.constant 0 : index
    %21 = vector.load %arg5[%c0_10, %c0_11] : memref<4x1xi32, #tpu.memory_space<vmem>>, vector<4x1xi32>
    %c1_i32 = arith.constant 1 : i32
    %22 = vector.broadcast %c1_i32 : i32 to vector<4x128xi32>
    %23 = arith.cmpi sge, %0, %22 : vector<4x128xi32>
    %c0_12 = arith.constant 0 : index
    %c0_13 = arith.constant 0 : index
    %24 = vector.load %arg4[%c0_12, %c0_13] : memref<4x128xi32, #tpu.memory_space<vmem>>, vector<4x128xi32>
    %c0_i32_14 = arith.constant 0 : i32
    %25 = vector.broadcast %c0_i32_14 : i32 to vector<4x128xi32>
    %26 = arith.cmpi sgt, %24, %25 : vector<4x128xi32>
    %cst_15 = arith.constant -1.000000e+30 : f32
    %27 = vector.broadcast %cst_15 : f32 to vector<4x128xf32>
    %c8_i32 = arith.constant 8 : i32
    %28 = arith.muli %arg1, %c8_i32 : i32
    %c0_16 = arith.constant 0 : index
    %c0_17 = arith.constant 0 : index
    %29 = vector.load %arg8[%c0_16, %c0_17] : memref<4x128xf32, #tpu.memory_space<vmem>>, vector<4x128xf32>
    %c0_i32_18 = arith.constant 0 : i32
    %30 = arith.addi %28, %c0_i32_18 : i32
    %c1_i32_19 = arith.constant 1 : i32
    %31 = tpu.dynamic_rotate %29 by %c1_i32_19 dim 1 : vector<4x128xf32>, i32 -> vector<4x128xf32>
    %32 = arith.select %23, %31, %27 : vector<4x128xi1>, vector<4x128xf32>
    %c2_i32 = arith.constant 2 : i32
    %33 = tpu.dynamic_rotate %29 by %c2_i32 dim 1 : vector<4x128xf32>, i32 -> vector<4x128xf32>
    %34 = arith.select %26, %33, %27 : vector<4x128xi1>, vector<4x128xf32>
    %35 = arith.maximumf %32, %34 : vector<4x128xf32>
    %36 = arith.maximumf %29, %35 : vector<4x128xf32>
    %37 = arith.subf %29, %36 : vector<4x128xf32>
    %38 = math.exp %37 : vector<4x128xf32>
    %39 = arith.subf %32, %36 : vector<4x128xf32>
    %40 = math.exp %39 : vector<4x128xf32>
    %41 = arith.addf %38, %40 : vector<4x128xf32>
    %42 = arith.subf %34, %36 : vector<4x128xf32>
    %43 = math.exp %42 : vector<4x128xf32>
    %44 = arith.addf %41, %43 : vector<4x128xf32>
    %45 = math.log %44 : vector<4x128xf32>
    %46 = arith.addf %36, %45 : vector<4x128xf32>
    %47 = vector.extract_strided_slice %17 {offsets = [0, 0, 0], sizes = [4, 1, 128], strides = [1, 1, 1]} : vector<4x8x128xf32> to vector<4x1x128xf32>
    %48 = vector.shape_cast %47 : vector<4x1x128xf32> to vector<4x128xf32>
    %49 = arith.addf %46, %48 : vector<4x128xf32>
    %cst_20 = arith.constant -1.000000e+30 : f32
    %50 = vector.broadcast %cst_20 : f32 to vector<4x128xf32>
    %51 = arith.maximumf %49, %50 : vector<4x128xf32>
    %52 = vector.broadcast %30 : i32 to vector<4x1xi32>
    %53 = arith.cmpi slt, %52, %21 : vector<4x1xi32>
    %c1_i32_21 = arith.constant 1 : i32
    %54 = arith.cmpi sge, %30, %c1_i32_21 : i32
    %55 = vector.broadcast %54 : i1 to vector<4x1xi1>
    %56 = arith.andi %55, %53 : vector<4x1xi1>
    %57 = vector.shape_cast %56 : vector<4x1xi1> to vector<4x1xi1>
    %58 = vector.broadcast %57 : vector<4x1xi1> to vector<4x128xi1>
    %59 = arith.select %58, %51, %29 : vector<4x128xi1>, vector<4x128xf32>
    %c1_i32_22 = arith.constant 1 : i32
    %60 = arith.addi %28, %c1_i32_22 : i32
    %c1_i32_23 = arith.constant 1 : i32
    %61 = tpu.dynamic_rotate %59 by %c1_i32_23 dim 1 : vector<4x128xf32>, i32 -> vector<4x128xf32>
    %62 = arith.select %23, %61, %27 : vector<4x128xi1>, vector<4x128xf32>
    %c2_i32_24 = arith.constant 2 : i32
    %63 = tpu.dynamic_rotate %59 by %c2_i32_24 dim 1 : vector<4x128xf32>, i32 -> vector<4x128xf32>
    %64 = arith.select %26, %63, %27 : vector<4x128xi1>, vector<4x128xf32>
    %65 = arith.maximumf %62, %64 : vector<4x128xf32>
    %66 = arith.maximumf %59, %65 : vector<4x128xf32>
    %67 = arith.subf %59, %66 : vector<4x128xf32>
    %68 = math.exp %67 : vector<4x128xf32>
    %69 = arith.subf %62, %66 : vector<4x128xf32>
    %70 = math.exp %69 : vector<4x128xf32>
    %71 = arith.addf %68, %70 : vector<4x128xf32>
    %72 = arith.subf %64, %66 : vector<4x128xf32>
    %73 = math.exp %72 : vector<4x128xf32>
    %74 = arith.addf %71, %73 : vector<4x128xf32>
    %75 = math.log %74 : vector<4x128xf32>
    %76 = arith.addf %66, %75 : vector<4x128xf32>
    %77 = vector.extract_strided_slice %17 {offsets = [0, 1, 0], sizes = [4, 1, 128], strides = [1, 1, 1]} : vector<4x8x128xf32> to vector<4x1x128xf32>
    %78 = vector.shape_cast %77 : vector<4x1x128xf32> to vector<4x128xf32>
    %79 = arith.addf %76, %78 : vector<4x128xf32>
    %cst_25 = arith.constant -1.000000e+30 : f32
    %80 = vector.broadcast %cst_25 : f32 to vector<4x128xf32>
    %81 = arith.maximumf %79, %80 : vector<4x128xf32>
    %82 = vector.broadcast %60 : i32 to vector<4x1xi32>
    %83 = arith.cmpi slt, %82, %21 : vector<4x1xi32>
    %84 = vector.shape_cast %83 : vector<4x1xi1> to vector<4x1xi1>
    %85 = vector.broadcast %84 : vector<4x1xi1> to vector<4x128xi1>
    %86 = arith.select %85, %81, %59 : vector<4x128xi1>, vector<4x128xf32>
    %c2_i32_26 = arith.constant 2 : i32
    %87 = arith.addi %28, %c2_i32_26 : i32
    %c1_i32_27 = arith.constant 1 : i32
    %88 = tpu.dynamic_rotate %86 by %c1_i32_27 dim 1 : vector<4x128xf32>, i32 -> vector<4x128xf32>
    %89 = arith.select %23, %88, %27 : vector<4x128xi1>, vector<4x128xf32>
    %c2_i32_28 = arith.constant 2 : i32
    %90 = tpu.dynamic_rotate %86 by %c2_i32_28 dim 1 : vector<4x128xf32>, i32 -> vector<4x128xf32>
    %91 = arith.select %26, %90, %27 : vector<4x128xi1>, vector<4x128xf32>
    %92 = arith.maximumf %89, %91 : vector<4x128xf32>
    %93 = arith.maximumf %86, %92 : vector<4x128xf32>
    %94 = arith.subf %86, %93 : vector<4x128xf32>
    %95 = math.exp %94 : vector<4x128xf32>
    %96 = arith.subf %89, %93 : vector<4x128xf32>
    %97 = math.exp %96 : vector<4x128xf32>
    %98 = arith.addf %95, %97 : vector<4x128xf32>
    %99 = arith.subf %91, %93 : vector<4x128xf32>
    %100 = math.exp %99 : vector<4x128xf32>
    %101 = arith.addf %98, %100 : vector<4x128xf32>
    %102 = math.log %101 : vector<4x128xf32>
    %103 = arith.addf %93, %102 : vector<4x128xf32>
    %104 = vector.extract_strided_slice %17 {offsets = [0, 2, 0], sizes = [4, 1, 128], strides = [1, 1, 1]} : vector<4x8x128xf32> to vector<4x1x128xf32>
    %105 = vector.shape_cast %104 : vector<4x1x128xf32> to vector<4x128xf32>
    %106 = arith.addf %103, %105 : vector<4x128xf32>
    %cst_29 = arith.constant -1.000000e+30 : f32
    %107 = vector.broadcast %cst_29 : f32 to vector<4x128xf32>
    %108 = arith.maximumf %106, %107 : vector<4x128xf32>
    %109 = vector.broadcast %87 : i32 to vector<4x1xi32>
    %110 = arith.cmpi slt, %109, %21 : vector<4x1xi32>
    %111 = vector.shape_cast %110 : vector<4x1xi1> to vector<4x1xi1>
    %112 = vector.broadcast %111 : vector<4x1xi1> to vector<4x128xi1>
    %113 = arith.select %112, %108, %86 : vector<4x128xi1>, vector<4x128xf32>
    %c3_i32 = arith.constant 3 : i32
    %114 = arith.addi %28, %c3_i32 : i32
    %c1_i32_30 = arith.constant 1 : i32
    %115 = tpu.dynamic_rotate %113 by %c1_i32_30 dim 1 : vector<4x128xf32>, i32 -> vector<4x128xf32>
    %116 = arith.select %23, %115, %27 : vector<4x128xi1>, vector<4x128xf32>
    %c2_i32_31 = arith.constant 2 : i32
    %117 = tpu.dynamic_rotate %113 by %c2_i32_31 dim 1 : vector<4x128xf32>, i32 -> vector<4x128xf32>
    %118 = arith.select %26, %117, %27 : vector<4x128xi1>, vector<4x128xf32>
    %119 = arith.maximumf %116, %118 : vector<4x128xf32>
    %120 = arith.maximumf %113, %119 : vector<4x128xf32>
    %121 = arith.subf %113, %120 : vector<4x128xf32>
    %122 = math.exp %121 : vector<4x128xf32>
    %123 = arith.subf %116, %120 : vector<4x128xf32>
    %124 = math.exp %123 : vector<4x128xf32>
    %125 = arith.addf %122, %124 : vector<4x128xf32>
    %126 = arith.subf %118, %120 : vector<4x128xf32>
    %127 = math.exp %126 : vector<4x128xf32>
    %128 = arith.addf %125, %127 : vector<4x128xf32>
    %129 = math.log %128 : vector<4x128xf32>
    %130 = arith.addf %120, %129 : vector<4x128xf32>
    %131 = vector.extract_strided_slice %17 {offsets = [0, 3, 0], sizes = [4, 1, 128], strides = [1, 1, 1]} : vector<4x8x128xf32> to vector<4x1x128xf32>
    %132 = vector.shape_cast %131 : vector<4x1x128xf32> to vector<4x128xf32>
    %133 = arith.addf %130, %132 : vector<4x128xf32>
    %cst_32 = arith.constant -1.000000e+30 : f32
    %134 = vector.broadcast %cst_32 : f32 to vector<4x128xf32>
    %135 = arith.maximumf %133, %134 : vector<4x128xf32>
    %136 = vector.broadcast %114 : i32 to vector<4x1xi32>
    %137 = arith.cmpi slt, %136, %21 : vector<4x1xi32>
    %138 = vector.shape_cast %137 : vector<4x1xi1> to vector<4x1xi1>
    %139 = vector.broadcast %138 : vector<4x1xi1> to vector<4x128xi1>
    %140 = arith.select %139, %135, %113 : vector<4x128xi1>, vector<4x128xf32>
    %c4_i32 = arith.constant 4 : i32
    %141 = arith.addi %28, %c4_i32 : i32
    %c1_i32_33 = arith.constant 1 : i32
    %142 = tpu.dynamic_rotate %140 by %c1_i32_33 dim 1 : vector<4x128xf32>, i32 -> vector<4x128xf32>
    %143 = arith.select %23, %142, %27 : vector<4x128xi1>, vector<4x128xf32>
    %c2_i32_34 = arith.constant 2 : i32
    %144 = tpu.dynamic_rotate %140 by %c2_i32_34 dim 1 : vector<4x128xf32>, i32 -> vector<4x128xf32>
    %145 = arith.select %26, %144, %27 : vector<4x128xi1>, vector<4x128xf32>
    %146 = arith.maximumf %143, %145 : vector<4x128xf32>
    %147 = arith.maximumf %140, %146 : vector<4x128xf32>
    %148 = arith.subf %140, %147 : vector<4x128xf32>
    %149 = math.exp %148 : vector<4x128xf32>
    %150 = arith.subf %143, %147 : vector<4x128xf32>
    %151 = math.exp %150 : vector<4x128xf32>
    %152 = arith.addf %149, %151 : vector<4x128xf32>
    %153 = arith.subf %145, %147 : vector<4x128xf32>
    %154 = math.exp %153 : vector<4x128xf32>
    %155 = arith.addf %152, %154 : vector<4x128xf32>
    %156 = math.log %155 : vector<4x128xf32>
    %157 = arith.addf %147, %156 : vector<4x128xf32>
    %158 = vector.extract_strided_slice %17 {offsets = [0, 4, 0], sizes = [4, 1, 128], strides = [1, 1, 1]} : vector<4x8x128xf32> to vector<4x1x128xf32>
    %159 = vector.shape_cast %158 : vector<4x1x128xf32> to vector<4x128xf32>
    %160 = arith.addf %157, %159 : vector<4x128xf32>
    %cst_35 = arith.constant -1.000000e+30 : f32
    %161 = vector.broadcast %cst_35 : f32 to vector<4x128xf32>
    %162 = arith.maximumf %160, %161 : vector<4x128xf32>
    %163 = vector.broadcast %141 : i32 to vector<4x1xi32>
    %164 = arith.cmpi slt, %163, %21 : vector<4x1xi32>
    %165 = vector.shape_cast %164 : vector<4x1xi1> to vector<4x1xi1>
    %166 = vector.broadcast %165 : vector<4x1xi1> to vector<4x128xi1>
    %167 = arith.select %166, %162, %140 : vector<4x128xi1>, vector<4x128xf32>
    %c5_i32 = arith.constant 5 : i32
    %168 = arith.addi %28, %c5_i32 : i32
    %c1_i32_36 = arith.constant 1 : i32
    %169 = tpu.dynamic_rotate %167 by %c1_i32_36 dim 1 : vector<4x128xf32>, i32 -> vector<4x128xf32>
    %170 = arith.select %23, %169, %27 : vector<4x128xi1>, vector<4x128xf32>
    %c2_i32_37 = arith.constant 2 : i32
    %171 = tpu.dynamic_rotate %167 by %c2_i32_37 dim 1 : vector<4x128xf32>, i32 -> vector<4x128xf32>
    %172 = arith.select %26, %171, %27 : vector<4x128xi1>, vector<4x128xf32>
    %173 = arith.maximumf %170, %172 : vector<4x128xf32>
    %174 = arith.maximumf %167, %173 : vector<4x128xf32>
    %175 = arith.subf %167, %174 : vector<4x128xf32>
    %176 = math.exp %175 : vector<4x128xf32>
    %177 = arith.subf %170, %174 : vector<4x128xf32>
    %178 = math.exp %177 : vector<4x128xf32>
    %179 = arith.addf %176, %178 : vector<4x128xf32>
    %180 = arith.subf %172, %174 : vector<4x128xf32>
    %181 = math.exp %180 : vector<4x128xf32>
    %182 = arith.addf %179, %181 : vector<4x128xf32>
    %183 = math.log %182 : vector<4x128xf32>
    %184 = arith.addf %174, %183 : vector<4x128xf32>
    %185 = vector.extract_strided_slice %17 {offsets = [0, 5, 0], sizes = [4, 1, 128], strides = [1, 1, 1]} : vector<4x8x128xf32> to vector<4x1x128xf32>
    %186 = vector.shape_cast %185 : vector<4x1x128xf32> to vector<4x128xf32>
    %187 = arith.addf %184, %186 : vector<4x128xf32>
    %cst_38 = arith.constant -1.000000e+30 : f32
    %188 = vector.broadcast %cst_38 : f32 to vector<4x128xf32>
    %189 = arith.maximumf %187, %188 : vector<4x128xf32>
    %190 = vector.broadcast %168 : i32 to vector<4x1xi32>
    %191 = arith.cmpi slt, %190, %21 : vector<4x1xi32>
    %192 = vector.shape_cast %191 : vector<4x1xi1> to vector<4x1xi1>
    %193 = vector.broadcast %192 : vector<4x1xi1> to vector<4x128xi1>
    %194 = arith.select %193, %189, %167 : vector<4x128xi1>, vector<4x128xf32>
    %c6_i32 = arith.constant 6 : i32
    %195 = arith.addi %28, %c6_i32 : i32
    %c1_i32_39 = arith.constant 1 : i32
    %196 = tpu.dynamic_rotate %194 by %c1_i32_39 dim 1 : vector<4x128xf32>, i32 -> vector<4x128xf32>
    %197 = arith.select %23, %196, %27 : vector<4x128xi1>, vector<4x128xf32>
    %c2_i32_40 = arith.constant 2 : i32
    %198 = tpu.dynamic_rotate %194 by %c2_i32_40 dim 1 : vector<4x128xf32>, i32 -> vector<4x128xf32>
    %199 = arith.select %26, %198, %27 : vector<4x128xi1>, vector<4x128xf32>
    %200 = arith.maximumf %197, %199 : vector<4x128xf32>
    %201 = arith.maximumf %194, %200 : vector<4x128xf32>
    %202 = arith.subf %194, %201 : vector<4x128xf32>
    %203 = math.exp %202 : vector<4x128xf32>
    %204 = arith.subf %197, %201 : vector<4x128xf32>
    %205 = math.exp %204 : vector<4x128xf32>
    %206 = arith.addf %203, %205 : vector<4x128xf32>
    %207 = arith.subf %199, %201 : vector<4x128xf32>
    %208 = math.exp %207 : vector<4x128xf32>
    %209 = arith.addf %206, %208 : vector<4x128xf32>
    %210 = math.log %209 : vector<4x128xf32>
    %211 = arith.addf %201, %210 : vector<4x128xf32>
    %212 = vector.extract_strided_slice %17 {offsets = [0, 6, 0], sizes = [4, 1, 128], strides = [1, 1, 1]} : vector<4x8x128xf32> to vector<4x1x128xf32>
    %213 = vector.shape_cast %212 : vector<4x1x128xf32> to vector<4x128xf32>
    %214 = arith.addf %211, %213 : vector<4x128xf32>
    %cst_41 = arith.constant -1.000000e+30 : f32
    %215 = vector.broadcast %cst_41 : f32 to vector<4x128xf32>
    %216 = arith.maximumf %214, %215 : vector<4x128xf32>
    %217 = vector.broadcast %195 : i32 to vector<4x1xi32>
    %218 = arith.cmpi slt, %217, %21 : vector<4x1xi32>
    %219 = vector.shape_cast %218 : vector<4x1xi1> to vector<4x1xi1>
    %220 = vector.broadcast %219 : vector<4x1xi1> to vector<4x128xi1>
    %221 = arith.select %220, %216, %194 : vector<4x128xi1>, vector<4x128xf32>
    %c7_i32 = arith.constant 7 : i32
    %222 = arith.addi %28, %c7_i32 : i32
    %c1_i32_42 = arith.constant 1 : i32
    %223 = tpu.dynamic_rotate %221 by %c1_i32_42 dim 1 : vector<4x128xf32>, i32 -> vector<4x128xf32>
    %224 = arith.select %23, %223, %27 : vector<4x128xi1>, vector<4x128xf32>
    %c2_i32_43 = arith.constant 2 : i32
    %225 = tpu.dynamic_rotate %221 by %c2_i32_43 dim 1 : vector<4x128xf32>, i32 -> vector<4x128xf32>
    %226 = arith.select %26, %225, %27 : vector<4x128xi1>, vector<4x128xf32>
    %227 = arith.maximumf %224, %226 : vector<4x128xf32>
    %228 = arith.maximumf %221, %227 : vector<4x128xf32>
    %229 = arith.subf %221, %228 : vector<4x128xf32>
    %230 = math.exp %229 : vector<4x128xf32>
    %231 = arith.subf %224, %228 : vector<4x128xf32>
    %232 = math.exp %231 : vector<4x128xf32>
    %233 = arith.addf %230, %232 : vector<4x128xf32>
    %234 = arith.subf %226, %228 : vector<4x128xf32>
    %235 = math.exp %234 : vector<4x128xf32>
    %236 = arith.addf %233, %235 : vector<4x128xf32>
    %237 = math.log %236 : vector<4x128xf32>
    %238 = arith.addf %228, %237 : vector<4x128xf32>
    %239 = vector.extract_strided_slice %17 {offsets = [0, 7, 0], sizes = [4, 1, 128], strides = [1, 1, 1]} : vector<4x8x128xf32> to vector<4x1x128xf32>
    %240 = vector.shape_cast %239 : vector<4x1x128xf32> to vector<4x128xf32>
    %241 = arith.addf %238, %240 : vector<4x128xf32>
    %cst_44 = arith.constant -1.000000e+30 : f32
    %242 = vector.broadcast %cst_44 : f32 to vector<4x128xf32>
    %243 = arith.maximumf %241, %242 : vector<4x128xf32>
    %244 = vector.broadcast %222 : i32 to vector<4x1xi32>
    %245 = arith.cmpi slt, %244, %21 : vector<4x1xi32>
    %246 = vector.shape_cast %245 : vector<4x1xi1> to vector<4x1xi1>
    %247 = vector.broadcast %246 : vector<4x1xi1> to vector<4x128xi1>
    %248 = arith.select %247, %243, %221 : vector<4x128xi1>, vector<4x128xf32>
    %c0_45 = arith.constant 0 : index
    %c0_46 = arith.constant 0 : index
    %249 = vector.load %arg8[%c0_45, %c0_46] : memref<4x128xf32, #tpu.memory_space<vmem>>, vector<4x128xf32>
    tpu.vector_store %arg8[%c0_45, %c0_46], %248 {strides = array<i32>} : memref<4x128xf32, #tpu.memory_space<vmem>>, vector<4x128xf32>,
    %c3_i32_47 = arith.constant 3 : i32
    %250 = arith.cmpi eq, %arg1, %c3_i32_47 : i32
    %251 = arith.extui %250 : i1 to i32
    %c0_i32_48 = arith.constant 0 : i32
    %252 = arith.cmpi ne, %251, %c0_i32_48 : i32
    scf.if %252 {
      %c0_49 = arith.constant 0 : index
      %c0_50 = arith.constant 0 : index
      %253 = vector.load %arg6[%c0_49, %c0_50] : memref<4x1xi32, #tpu.memory_space<vmem>>, vector<4x1xi32>
      %c2_i32_51 = arith.constant 2 : i32
      %254 = vector.broadcast %c2_i32_51 : i32 to vector<4x1xi32>
      %255 = arith.muli %254, %253 : vector<4x1xi32>
      %256 = vector.broadcast %255 : vector<4x1xi32> to vector<4x128xi32>
      %257 = arith.cmpi eq, %0, %256 : vector<4x128xi32>
      %258 = arith.select %257, %248, %27 : vector<4x128xi1>, vector<4x128xf32>
      %cst_52 = arith.constant dense<0xFF800000> : vector<4xf32>
      %259 = vector.multi_reduction <maximumf>, %258, %cst_52 [1] : vector<4x128xf32> to vector<4xf32>
      %260 = vector.shape_cast %259 : vector<4xf32> to vector<4x1xf32>
      %c1_i32_53 = arith.constant 1 : i32
      %261 = vector.broadcast %c1_i32_53 : i32 to vector<4x1xi32>
      %262 = arith.subi %255, %261 : vector<4x1xi32>
      %263 = vector.broadcast %262 : vector<4x1xi32> to vector<4x128xi32>
      %264 = arith.cmpi eq, %0, %263 : vector<4x128xi32>
      %265 = arith.select %264, %248, %27 : vector<4x128xi1>, vector<4x128xf32>
      %cst_54 = arith.constant dense<0xFF800000> : vector<4xf32>
      %266 = vector.multi_reduction <maximumf>, %265, %cst_54 [1] : vector<4x128xf32> to vector<4xf32>
      %267 = vector.shape_cast %266 : vector<4xf32> to vector<4x1xf32>
      %268 = arith.maximumf %260, %267 : vector<4x1xf32>
      %269 = arith.subf %260, %268 : vector<4x1xf32>
      %270 = math.exp %269 : vector<4x1xf32>
      %271 = arith.subf %267, %268 : vector<4x1xf32>
      %272 = math.exp %271 : vector<4x1xf32>
      %273 = arith.addf %270, %272 : vector<4x1xf32>
      %274 = math.log %273 : vector<4x1xf32>
      %275 = arith.addf %268, %274 : vector<4x1xf32>
      %cst_55 = arith.constant 0.000000e+00 : f32
      %276 = vector.broadcast %cst_55 : f32 to vector<4x1xf32>
      %277 = arith.subf %276, %275 : vector<4x1xf32>
      %c0_56 = arith.constant 0 : index
      %c0_57 = arith.constant 0 : index
      %278 = vector.load %arg7[%c0_56, %c0_57] : memref<4x1xf32, #tpu.memory_space<vmem>>, vector<4x1xf32>
      tpu.vector_store %arg7[%c0_56, %c0_57], %277 {strides = array<i32>} : memref<4x1xf32, #tpu.memory_space<vmem>>, vector<4x1xf32>,
    } else {
    }
    return
  }
  func.func @transform_0(%arg0: i32, %arg1: i32) -> (i32, i32, i32) {
    %c0_i32 = arith.constant 0 : i32
    %c0_i32_0 = arith.constant 0 : i32
    return %arg0, %arg1, %c0_i32 : i32, i32, i32
  }
  func.func @transform_1(%arg0: i32, %arg1: i32) -> (i32, i32, i32) {
    %c0_i32 = arith.constant 0 : i32
    %c0_i32_0 = arith.constant 0 : i32
    %c0_i32_1 = arith.constant 0 : i32
    return %arg0, %c0_i32, %c0_i32_0 : i32, i32, i32
  }
  func.func @transform_2(%arg0: i32, %arg1: i32) -> (i32, i32) {
    %c0_i32 = arith.constant 0 : i32
    %c0_i32_0 = arith.constant 0 : i32
    return %arg0, %c0_i32 : i32, i32
  }
  func.func @transform_3(%arg0: i32, %arg1: i32) -> (i32, i32) {
    %c0_i32 = arith.constant 0 : i32
    %c0_i32_0 = arith.constant 0 : i32
    return %arg0, %c0_i32 : i32, i32
  }
  func.func @transform_4(%arg0: i32, %arg1: i32) -> (i32, i32) {
    %c0_i32 = arith.constant 0 : i32
    %c0_i32_0 = arith.constant 0 : i32
    return %arg0, %c0_i32 : i32, i32
  }
  func.func @transform_5(%arg0: i32, %arg1: i32) -> (i32, i32) {
    %c0_i32 = arith.constant 0 : i32
    %c0_i32_0 = arith.constant 0 : i32
    return %arg0, %c0_i32 : i32, i32
  }
}

</mosaic_0001>

<llo_original>
// kernel: _ctc_loss_fwd.1
$region0: #{_ctc_loss_fwd.1}
  #allocation0 [shape = 'u32[]', space=smem, size = 0x4, offset = 0x4, fixed_abs, tag = 'smem constant byte address 0x4 - core index']
  #allocation1 [shape = 'u32[144,128]{1,0:T(1,128)}', space=vmem, size = 0x12000, scoped, tag = 'internal scratch']
  #allocation2 [shape = 'f32[4,128]{1,0:T(4,128)}', space=vmem, size = 0x800, scoped, tag = 'scratch operand']
  #allocation3 [shape = 'f32[4,128,32]{2,1,0:T(8,128)}', space=vmem, size = 0x40000, scoped, tag = 'scratch operand']
  %s0 = inlined_call_operand.vmem [shape: f32[4,32,32], index: 0, kind: input, shape index: {}]
  %s1 = inlined_call_operand.vmem [shape: s32[4,128,1], index: 1, kind: input, shape index: {}]
  %s2 = inlined_call_operand.vmem [shape: s32[4,128], index: 2, kind: input, shape index: {}]
  %s3 = inlined_call_operand.vmem [shape: s32[4,1], index: 3, kind: input, shape index: {}]
  %s4 = inlined_call_operand.vmem [shape: s32[4,1], index: 4, kind: input, shape index: {}]
  %s5 = inlined_call_operand.vmem [shape: f32[4,1], index: 5, kind: output, shape index: {}]
  %s6 = sld [smem:[#allocation0]]
  $region103: #{_ctc_loss_fwd.1} parent=0
    _
  %s8 = ssub.s32 1, %s6
  %s9 = scalar_select 0, %s8, %s6
  $region1: #{_ctc_loss_fwd.1} parent=0
    #allocation4 [shape = 'u8[32768]{0}', space=vmem, size = 0x8000, scoped, tag = 'input window, operand 0']
    loop: start=0, step=1, limit=6
    $region2: #{_ctc_loss_fwd.1} parent=1 // loop_pre_header
      _
    $region3: #{_ctc_loss_fwd.1} parent=1 // loop_header
      %s11 = sphi 0, %s15
      %p12 = scmp.ge.s32.totalorder %s11, 6
      %s18 = sphi 0, %s30
      %s19 = sphi 0, %s26
      %s20 = sphi 0, %s18
      %s21 = sphi 0, %s19
      %s22 = sphi 0, %s20
      %s23 = sphi 0, %s21
      %s35 = sphi 0, %s37
      %s38 = sphi 0, %s35
      %s39 = sphi 0, %s38
      %s55 = sphi 0, %s39
      %s61 = sphi 0, %s63
      %s64 = sphi 0, %s61
      %s65 = sphi 0, %s64
      %s81 = sphi 0, %s65
      %s87 = sphi 0, %s89
      %s90 = sphi 0, %s87
      %s91 = sphi 0, %s90
      %s107 = sphi 0, %s91
      %s113 = sphi 0, %s115
      %s116 = sphi 0, %s113
      %s117 = sphi 0, %s116
      %s133 = sphi 0, %s117
      %s139 = sphi 0, %s141
      %s142 = sphi 0, %s139
      %s143 = sphi 0, %s142
      %s159 = sphi 0, %s143
      %s165 = sphi 0, %s167
      %s168 = sphi 0, %s165
      %s169 = sphi 0, %s168
      %s185 = sphi 0, %s169
    $region4: #{_ctc_loss_fwd.1} parent=1 // loop_header_branch
      %14 = sbr.rel (%p12) target = $region8
    $region5: #{_ctc_loss_fwd.1} parent=1 // loop_body
      %s16 = ssub.s32 %s11, 1
      %s17 = ssub.s32 %s11, 2
      %s24 = sadd.s32 1, %s19
      %p25 = scmp.ge.s32.totalorder %s24, 4
      %s26 = scalar_select %p25, 0, %s24
      %s27 = sadd.s32 1, %s18
      %s28 = scalar_select %p25, %s27, %s18
      %p29 = scmp.ge.s32.totalorder %s28, 1
      %s30 = scalar_select %p29, 0, %s28
      %s31 = ssub.s32 %s18, %s30
      %s32 = ssub.s32 %s19, %s26
      %s33 = sor.u32 %s31, %s32
      %p34 = scmp.eq.s32.totalorder %s33, 0
      %s36 = sadd.s32 %s35, 1
      %s37 = scalar_select %p34, %s35, %s36
      %p40 = pneg %p34
      %p41 = scmp.eq.s32.totalorder %s11, 3
      %p42 = por %p40, %p41
      %p43 = scmp.ne.s32.totalorder %s35, %s38
      %p44 = scmp.eq.s32.totalorder %s11, 0
      %p45 = por %p43, %p44
      %p46 = scmp.ne.s32.totalorder %s35, %s38
      %p47 = scmp.eq.s32.totalorder %s16, 3
      %p48 = por %p46, %p47
      %p49 = scmp.ne.s32.totalorder %s38, %s39
      %p50 = scmp.eq.s32.totalorder %s16, 0
      %p51 = por %p49, %p50
      %p52 = scmp.ne.s32.totalorder %s38, %s39
      %p53 = scmp.eq.s32.totalorder %s17, 3
      %p54 = por %p52, %p53
      %p56 = scmp.ne.s32.totalorder %s39, %s55
      %p57 = scmp.eq.s32.totalorder %s17, 0
      %p58 = por %p56, %p57
      %s59 = ssub.s32 %s18, %s30
      %p60 = scmp.eq.s32.totalorder %s59, 0
      %s62 = sadd.s32 %s61, 1
      %s63 = scalar_select %p60, %s61, %s62
      %p66 = pneg %p60
      %p67 = scmp.eq.s32.totalorder %s11, 3
      %p68 = por %p66, %p67
      %p69 = scmp.ne.s32.totalorder %s61, %s64
      %p70 = scmp.eq.s32.totalorder %s11, 0
      %p71 = por %p69, %p70
      %p72 = scmp.ne.s32.totalorder %s61, %s64
      %p73 = scmp.eq.s32.totalorder %s16, 3
      %p74 = por %p72, %p73
      %p75 = scmp.ne.s32.totalorder %s64, %s65
      %p76 = scmp.eq.s32.totalorder %s16, 0
      %p77 = por %p75, %p76
      %p78 = scmp.ne.s32.totalorder %s64, %s65
      %p79 = scmp.eq.s32.totalorder %s17, 3
      %p80 = por %p78, %p79
      %p82 = scmp.ne.s32.totalorder %s65, %s81
      %p83 = scmp.eq.s32.totalorder %s17, 0
      %p84 = por %p82, %p83
      %s85 = ssub.s32 %s18, %s30
      %p86 = scmp.eq.s32.totalorder %s85, 0
      %s88 = sadd.s32 %s87, 1
      %s89 = scalar_select %p86, %s87, %s88
      %p92 = pneg %p86
      %p93 = scmp.eq.s32.totalorder %s11, 3
      %p94 = por %p92, %p93
      %p95 = scmp.ne.s32.totalorder %s87, %s90
      %p96 = scmp.eq.s32.totalorder %s11, 0
      %p97 = por %p95, %p96
      %p98 = scmp.ne.s32.totalorder %s87, %s90
      %p99 = scmp.eq.s32.totalorder %s16, 3
      %p100 = por %p98, %p99
      %p101 = scmp.ne.s32.totalorder %s90, %s91
      %p102 = scmp.eq.s32.totalorder %s16, 0
      %p103 = por %p101, %p102
      %p104 = scmp.ne.s32.totalorder %s90, %s91
      %p105 = scmp.eq.s32.totalorder %s17, 3
      %p106 = por %p104, %p105
      %p108 = scmp.ne.s32.totalorder %s91, %s107
      %p109 = scmp.eq.s32.totalorder %s17, 0
      %p110 = por %p108, %p109
      %s111 = ssub.s32 %s18, %s30
      %p112 = scmp.eq.s32.totalorder %s111, 0
      %s114 = sadd.s32 %s113, 1
      %s115 = scalar_select %p112, %s113, %s114
      %p118 = pneg %p112
      %p119 = scmp.eq.s32.totalorder %s11, 3
      %p120 = por %p118, %p119
      %p121 = scmp.ne.s32.totalorder %s113, %s116
      %p122 = scmp.eq.s32.totalorder %s11, 0
      %p123 = por %p121, %p122
      %p124 = scmp.ne.s32.totalorder %s113, %s116
      %p125 = scmp.eq.s32.totalorder %s16, 3
      %p126 = por %p124, %p125
      %p127 = scmp.ne.s32.totalorder %s116, %s117
      %p128 = scmp.eq.s32.totalorder %s16, 0
      %p129 = por %p127, %p128
      %p130 = scmp.ne.s32.totalorder %s116, %s117
      %p131 = scmp.eq.s32.totalorder %s17, 3
      %p132 = por %p130, %p131
      %p134 = scmp.ne.s32.totalorder %s117, %s133
      %p135 = scmp.eq.s32.totalorder %s17, 0
      %p136 = por %p134, %p135
      %s137 = ssub.s32 %s18, %s30
      %p138 = scmp.eq.s32.totalorder %s137, 0
      %s140 = sadd.s32 %s139, 1
      %s141 = scalar_select %p138, %s139, %s140
      %p144 = pneg %p138
      %p145 = scmp.eq.s32.totalorder %s11, 3
      %p146 = por %p144, %p145
      %p147 = scmp.ne.s32.totalorder %s139, %s142
      %p148 = scmp.eq.s32.totalorder %s11, 0
      %p149 = por %p147, %p148
      %p150 = scmp.ne.s32.totalorder %s139, %s142
      %p151 = scmp.eq.s32.totalorder %s16, 3
      %p152 = por %p150, %p151
      %p153 = scmp.ne.s32.totalorder %s142, %s143
      %p154 = scmp.eq.s32.totalorder %s16, 0
      %p155 = por %p153, %p154
      %p156 = scmp.ne.s32.totalorder %s142, %s143
      %p157 = scmp.eq.s32.totalorder %s17, 3
      %p158 = por %p156, %p157
      %p160 = scmp.ne.s32.totalorder %s143, %s159
      %p161 = scmp.eq.s32.totalorder %s17, 0
      %p162 = por %p160, %p161
      %s163 = ssub.s32 %s18, %s30
      %p164 = scmp.eq.s32.totalorder %s163, 0
      %s166 = sadd.s32 %s165, 1
      %s167 = scalar_select %p164, %s165, %s166
      %p170 = pneg %p164
      %p171 = scmp.eq.s32.totalorder %s11, 3
      %p172 = por %p170, %p171
      %p173 = scmp.ne.s32.totalorder %s165, %s168
      %p174 = scmp.eq.s32.totalorder %s11, 0
      %p175 = por %p173, %p174
      %p176 = scmp.ne.s32.totalorder %s165, %s168
      %p177 = scmp.eq.s32.totalorder %s16, 3
      %p178 = por %p176, %p177
      %p179 = scmp.ne.s32.totalorder %s168, %s169
      %p180 = scmp.eq.s32.totalorder %s16, 0
      %p181 = por %p179, %p180
      %p182 = scmp.ne.s32.totalorder %s168, %s169
      %p183 = scmp.eq.s32.totalorder %s17, 3
      %p184 = por %p182, %p183
      %p186 = scmp.ne.s32.totalorder %s169, %s185
      %p187 = scmp.eq.s32.totalorder %s17, 0
      %p188 = por %p186, %p187
      %p189 = scmp.le.s32.totalorder 1, %s11
      %p190 = scmp.lt.s32.totalorder %s11, 5
      %p191 = pnand %p189, %p190
      %p192 = pneg %p191
      // Predicated region
      $region9: #{_ctc_loss_fwd.1} parent=5 // pred_check
        _
      $region10: #{_ctc_loss_fwd.1} parent=5 // pred_check_branch
        %194 = sbr.rel (%p191) target = $region12
      $region11: #{_ctc_loss_fwd.1} parent=5 // pred_region
        %s195 = ssub.s32 %s11, 1
        // Predicated region
        $region13: #{_ctc_loss_fwd.1} parent=11 // pred_check
          %p196 = pneg %p77
        $region14: #{_ctc_loss_fwd.1} parent=11 // pred_check_branch
          %198 = sbr.rel (%p196) target = $region16
        $region15: #{_ctc_loss_fwd.1} parent=11 // pred_region
          %s199 = smul.u32 4, %s20
          %p200 = scmp.lt.s32.totalorder %s199, 3
          %s201 = scalar_select %p200, %s199, 3
          %s202 = smul.addr %s201, 16
          %s203 = smul.addr %s202, 8
          %s204 = scalar_lea.vmem %s1, %s203
          %s205 = smul.u32 4, %s20
        $region16: #{_ctc_loss_fwd.1} parent=11 // pred_fallthru
          _
        // Predicated region
        $region17: #{_ctc_loss_fwd.1} parent=11 // pred_check
          %p206 = pneg %p103
        $region18: #{_ctc_loss_fwd.1} parent=11 // pred_check_branch
          %208 = sbr.rel (%p206) target = $region20
        $region19: #{_ctc_loss_fwd.1} parent=11 // pred_region
          %p209 = scmp.lt.s32.totalorder %s20, 0
          %s210 = scalar_select %p209, %s20, 0
          %s211 = smul.addr %s210, 4
          %s212 = scalar_lea.vmem %s2, %s211
        $region20: #{_ctc_loss_fwd.1} parent=11 // pred_fallthru
          _
        // Predicated region
        $region21: #{_ctc_loss_fwd.1} parent=11 // pred_check
          %p213 = pneg %p129
        $region22: #{_ctc_loss_fwd.1} parent=11 // pred_check_branch
          %215 = sbr.rel (%p213) target = $region24
        $region23: #{_ctc_loss_fwd.1} parent=11 // pred_region
          %p216 = scmp.lt.s32.totalorder %s20, 0
          %s217 = scalar_select %p216, %s20, 0
          %s218 = smul.addr %s217, 4
          %s219 = scalar_lea.vmem %s3, %s218
        $region24: #{_ctc_loss_fwd.1} parent=11 // pred_fallthru
          _
        // Predicated region
        $region25: #{_ctc_loss_fwd.1} parent=11 // pred_check
          %p220 = pneg %p155
        $region26: #{_ctc_loss_fwd.1} parent=11 // pred_check_branch
          %222 = sbr.rel (%p220) target = $region28
        $region27: #{_ctc_loss_fwd.1} parent=11 // pred_region
          %p223 = scmp.lt.s32.totalorder %s20, 0
          %s224 = scalar_select %p223, %s20, 0
          %s225 = smul.addr %s224, 4
          %s226 = scalar_lea.vmem %s4, %s225
        $region28: #{_ctc_loss_fwd.1} parent=11 // pred_fallthru
          _
      $region12: #{_ctc_loss_fwd.1} parent=5 // pred_fallthru
        _
      %p227 = scmp.lt.s32.totalorder %s11, 4
      // Predicated region
      $region29: #{_ctc_loss_fwd.1} parent=5 // pred_check
        %p228 = pneg %p227
      $region30: #{_ctc_loss_fwd.1} parent=5 // pred_check_branch
        %230 = sbr.rel (%p228) target = $region32
      $region31: #{_ctc_loss_fwd.1} parent=5 // pred_region
        // Predicated region
        $region33: #{_ctc_loss_fwd.1} parent=31 // pred_check
          %p231 = pneg %p45
        $region34: #{_ctc_loss_fwd.1} parent=31 // pred_check_branch
          %233 = sbr.rel (%p231) target = $region36
        $region35: #{_ctc_loss_fwd.1} parent=31 // pred_region
          %s234 = sand.u32 %s35, 1
          %s235 = sand.u32 %s35, 1
          %s236 = smul.addr %s235, 32
          %s237 = scalar_lea.vmem [#allocation4], %s236
          %s238 = smul.u32 4, %s18
          %s239 = smul.addr %s238, 4
          %s240 = sadd.s32 %s19, %s239
          %s241 = smul.addr %s240, 8
          %s242 = scalar_lea.vmem %s0, %s241
          // Predicated region
          $region37: #{_ctc_loss_fwd.1} parent=35 // pred_check
            _
          $region38: #{_ctc_loss_fwd.1} parent=35 // pred_check_branch
            %244 = sbr.rel (0) target = $region40
          $region39: #{_ctc_loss_fwd.1} parent=35 // pred_region
            // Predicated region
            $region41: #{_ctc_loss_fwd.1} parent=39 // pred_check
              _
            $region42: #{_ctc_loss_fwd.1} parent=39 // pred_check_branch
              %246 = sbr.rel (0) target = $region44
            $region43: #{_ctc_loss_fwd.1} parent=39 // pred_region
              // Predicated region
              $region56: #{_ctc_loss_fwd.1} parent=43 // pred_check
                _
              $region57: #{_ctc_loss_fwd.1} parent=43 // pred_check_branch
                %268 = sbr.rel (0) target = $region59
              $region58: #{_ctc_loss_fwd.1} parent=43 // pred_region
                loop: start=0, step=1, limit=1
                $region60: #{_ctc_loss_fwd.1} parent=58 // loop_pre_header
                  _
                $region61: #{_ctc_loss_fwd.1} parent=58 // loop_header
                  %s270 = sphi 0, %s274
                  %p271 = scmp.ge.s32.totalorder %s270, 1
                  %s275 = sphi %s242, %s242
                  %s276 = sphi %s237, %s237
                $region62: #{_ctc_loss_fwd.1} parent=58 // loop_header_branch
                  %273 = sbr.rel (%p271) target = $region66
                $region63: #{_ctc_loss_fwd.1} parent=58 // loop_body
                  %v277 = vld [vmem:[%s275] sm:$0xff]
                  %278 = vst [vmem:[%s276] sm:$0xff] %v277
                  %v279 = vld [vmem:[%s275 + $0x20] sm:$0xff]
                  %280 = vst [vmem:[%s276 + $0x8] sm:$0xff] %v279
                  %v281 = vld [vmem:[%s275 + $0x40] sm:$0xff]
                  %282 = vst [vmem:[%s276 + $0x10] sm:$0xff] %v281
                  %v283 = vld [vmem:[%s275 + $0x60] sm:$0xff]
                  %284 = vst [vmem:[%s276 + $0x18] sm:$0xff] %v283
                $region64: #{_ctc_loss_fwd.1} parent=58 // loop_footer
                  %s274 = sadd.s32 1, %s270
                $region65: #{_ctc_loss_fwd.1} parent=58 // loop_footer_branch
                  %269 = sbr.rel target = $region61
                $region66: #{_ctc_loss_fwd.1} parent=58 // loop_exit
                  _
              $region59: #{_ctc_loss_fwd.1} parent=43 // pred_fallthru
                _
              // Predicated region
              $region67: #{_ctc_loss_fwd.1} parent=43 // pred_check
                _
              $region68: #{_ctc_loss_fwd.1} parent=43 // pred_check_branch
                %286 = sbr.rel target = $region70
              $region69: #{_ctc_loss_fwd.1} parent=43 // pred_region
                _
              $region70: #{_ctc_loss_fwd.1} parent=43 // pred_fallthru
                _
            $region44: #{_ctc_loss_fwd.1} parent=39 // pred_fallthru
              _
            // Predicated region
            $region45: #{_ctc_loss_fwd.1} parent=39 // pred_check
              _
            $region46: #{_ctc_loss_fwd.1} parent=39 // pred_check_branch
              %248 = sbr.rel target = $region48
            $region47: #{_ctc_loss_fwd.1} parent=39 // pred_region
              %s250 = ssub.s32 256, 1
              loop: start=0, step=1, limit=1
              $region49: #{_ctc_loss_fwd.1} parent=47 // loop_pre_header
                _
              $region50: #{_ctc_loss_fwd.1} parent=47 // loop_header
                %s252 = sphi 0, %s256
                %p253 = scmp.ge.s32.totalorder %s252, 1
                %s257 = sphi %s242, %s242
                %s258 = sphi %s237, %s237
              $region51: #{_ctc_loss_fwd.1} parent=47 // loop_header_branch
                %255 = sbr.rel (%p253) target = $region55
              $region52: #{_ctc_loss_fwd.1} parent=47 // loop_body
                %v259 = vld [vmem:[%s257] sm:%s250]
                %260 = vst [vmem:[%s258] sm:%s250] %v259
                %v261 = vld [vmem:[%s257 + $0x20] sm:%s250]
                %262 = vst [vmem:[%s258 + $0x8] sm:%s250] %v261
                %v263 = vld [vmem:[%s257 + $0x40] sm:%s250]
                %264 = vst [vmem:[%s258 + $0x10] sm:%s250] %v263
                %v265 = vld [vmem:[%s257 + $0x60] sm:%s250]
                %266 = vst [vmem:[%s258 + $0x18] sm:%s250] %v265
              $region53: #{_ctc_loss_fwd.1} parent=47 // loop_footer
                %s256 = sadd.s32 1, %s252
              $region54: #{_ctc_loss_fwd.1} parent=47 // loop_footer_branch
                %251 = sbr.rel target = $region50
              $region55: #{_ctc_loss_fwd.1} parent=47 // loop_exit
                _
            $region48: #{_ctc_loss_fwd.1} parent=39 // pred_fallthru
              _
          $region40: #{_ctc_loss_fwd.1} parent=35 // pred_fallthru
            _
          %287 = vnop
        $region36: #{_ctc_loss_fwd.1} parent=31 // pred_fallthru
          _
      $region32: #{_ctc_loss_fwd.1} parent=5 // pred_fallthru
        _
      %p288 = scmp.le.s32.totalorder 1, %s11
      %p289 = scmp.lt.s32.totalorder %s11, 5
      %p290 = pnand %p288, %p289
      %p291 = pneg %p290
      // Predicated region
      $region71: #{_ctc_loss_fwd.1} parent=5 // pred_check
        _
      $region72: #{_ctc_loss_fwd.1} parent=5 // pred_check_branch
        %293 = sbr.rel (%p290) target = $region74
      $region73: #{_ctc_loss_fwd.1} parent=5 // pred_region
        %s294 = ssub.s32 %s11, 1
        %s295 = sand.u32 %s38, 1
        %s296 = sand.u32 %s38, 1
        %s297 = smul.addr %s296, 32
        %s298 = scalar_lea.vmem [#allocation4], %s297
        // Predicated region
        $region75: #{_ctc_loss_fwd.1} parent=73 // pred_check
          %p299 = pneg %p51
        $region76: #{_ctc_loss_fwd.1} parent=73 // pred_check_branch
          %301 = sbr.rel (%p299) target = $region78
        $region77: #{_ctc_loss_fwd.1} parent=73 // pred_region
          _
        $region78: #{_ctc_loss_fwd.1} parent=73 // pred_fallthru
          _
        %s302 = sand.u32 %s38, 1
        %s303 = sand.u32 %s38, 1
        %s304 = smul.addr %s303, 32
        %s305 = scalar_lea.vmem [#allocation4], %s304
        %p306 = pneg %p51
        %p307 = pneg %p48
        %s308 = smul.u32 4, %s20
        %p309 = scmp.lt.s32.totalorder %s308, 3
        %s310 = scalar_select %p309, %s308, 3
        %s311 = smul.addr %s310, 16
        %s312 = smul.addr %s311, 8
        %s313 = scalar_lea.vmem %s1, %s312
        %p314 = pneg %p77
        %p315 = pneg %p74
        %p316 = scmp.lt.s32.totalorder %s20, 0
        %s317 = scalar_select %p316, %s20, 0
        %s318 = smul.addr %s317, 4
        %s319 = scalar_lea.vmem %s2, %s318
        %p320 = pneg %p103
        %p321 = pneg %p100
        %p322 = scmp.lt.s32.totalorder %s20, 0
        %s323 = scalar_select %p322, %s20, 0
        %s324 = smul.addr %s323, 4
        %s325 = scalar_lea.vmem %s3, %s324
        %p326 = pneg %p129
        %p327 = pneg %p126
        %p328 = scmp.lt.s32.totalorder %s20, 0
        %s329 = scalar_select %p328, %s20, 0
        %s330 = smul.addr %s329, 4
        %s331 = scalar_lea.vmem %s4, %s330
        %p332 = pneg %p155
        %p333 = pneg %p152
        %p334 = pneg %p181
        %p335 = pneg %p178
        %p336 = scmp.lt.s32.totalorder %s20, 0
        %s337 = scalar_select %p336, %s20, 0
        %s338 = smul.addr %s337, 4
        %s339 = scalar_lea.vmem %s5, %s338
        %s340 = smul.u32 4, %s20
        %s341 = smul.u32 4, %s20
        %p342 = scmp.lt.s32.totalorder %s341, 3
        %s343 = scalar_select %p342, %s341, 3
        %s344 = smul.addr %s343, 16
        %s345 = smul.addr %s344, 8
        %s346 = scalar_lea.vmem %s1, %s345
        %s347 = smul.u32 4, %s20
        %p348 = scmp.lt.s32.totalorder %s20, 0
        %s349 = scalar_select %p348, %s20, 0
        %s350 = smul.addr %s349, 4
        %s351 = scalar_lea.vmem %s2, %s350
        %p352 = scmp.lt.s32.totalorder %s20, 0
        %s353 = scalar_select %p352, %s20, 0
        %s354 = smul.addr %s353, 4
        %s355 = scalar_lea.vmem %s3, %s354
        %p356 = scmp.lt.s32.totalorder %s20, 0
        %s357 = scalar_select %p356, %s20, 0
        %s358 = smul.addr %s357, 4
        %s359 = scalar_lea.vmem %s4, %s358
        %p360 = scmp.lt.s32.totalorder %s20, 0
        %s361 = scalar_select %p360, %s20, 0
        %s362 = smul.addr %s361, 4
        %s363 = scalar_lea.vmem %s5, %s362
        %v364 = vlaneseq
        %v365 = vand.u32 %v364, 127
        %p366 = scmp.eq.s32.totalorder %s21, 0
        // Predicated region
        $region79: #{_ctc_loss_fwd.1} parent=73 // pred_check
          %p367 = pneg %p366
        $region80: #{_ctc_loss_fwd.1} parent=73 // pred_check_branch
          %369 = sbr.rel (%p367) target = $region82
        $region81: #{_ctc_loss_fwd.1} parent=73 // pred_region
          %v370 = vld [vmem:[%s346] sm:$0xff]
          %v371 = vld [vmem:[%s346 + $0x8] sm:$0xff]
          %v372 = vld [vmem:[%s346 + $0x10] sm:$0xff]
          %v373 = vld [vmem:[%s346 + $0x18] sm:$0xff]
          %v374 = vld [vmem:[%s346 + $0x20] sm:$0xff]
          %v375 = vld [vmem:[%s346 + $0x28] sm:$0xff]
          %v376 = vld [vmem:[%s346 + $0x30] sm:$0xff]
          %v377 = vld [vmem:[%s346 + $0x38] sm:$0xff]
          %v378 = vld [vmem:[%s346 + $0x40] sm:$0xff]
          %v379 = vld [vmem:[%s346 + $0x48] sm:$0xff]
          %v380 = vld [vmem:[%s346 + $0x50] sm:$0xff]
          %v381 = vld [vmem:[%s346 + $0x58] sm:$0xff]
          %v382 = vld [vmem:[%s346 + $0x60] sm:$0xff]
          %v383 = vld [vmem:[%s346 + $0x68] sm:$0xff]
          %v384 = vld [vmem:[%s346 + $0x70] sm:$0xff]
          %v385 = vld [vmem:[%s346 + $0x78] sm:$0xff]
          %v386 = vld [vmem:[%s346 + $0x80] sm:$0xff]
          %v387 = vld [vmem:[%s346 + $0x88] sm:$0xff]
          %v388 = vld [vmem:[%s346 + $0x90] sm:$0xff]
          %v389 = vld [vmem:[%s346 + $0x98] sm:$0xff]
          %v390 = vld [vmem:[%s346 + $0xa0] sm:$0xff]
          %v391 = vld [vmem:[%s346 + $0xa8] sm:$0xff]
          %v392 = vld [vmem:[%s346 + $0xb0] sm:$0xff]
          %v393 = vld [vmem:[%s346 + $0xb8] sm:$0xff]
          %v394 = vld [vmem:[%s346 + $0xc0] sm:$0xff]
          %v395 = vld [vmem:[%s346 + $0xc8] sm:$0xff]
          %v396 = vld [vmem:[%s346 + $0xd0] sm:$0xff]
          %v397 = vld [vmem:[%s346 + $0xd8] sm:$0xff]
          %v398 = vld [vmem:[%s346 + $0xe0] sm:$0xff]
          %v399 = vld [vmem:[%s346 + $0xe8] sm:$0xff]
          %v400 = vld [vmem:[%s346 + $0xf0] sm:$0xff]
          %v401 = vld [vmem:[%s346 + $0xf8] sm:$0xff]
          %v402 = vld [vmem:[%s346 + $0x100] sm:$0xff]
          %v403 = vld [vmem:[%s346 + $0x108] sm:$0xff]
          %v404 = vld [vmem:[%s346 + $0x110] sm:$0xff]
          %v405 = vld [vmem:[%s346 + $0x118] sm:$0xff]
          %v406 = vld [vmem:[%s346 + $0x120] sm:$0xff]
          %v407 = vld [vmem:[%s346 + $0x128] sm:$0xff]
          %v408 = vld [vmem:[%s346 + $0x130] sm:$0xff]
          %v409 = vld [vmem:[%s346 + $0x138] sm:$0xff]
          %v410 = vld [vmem:[%s346 + $0x140] sm:$0xff]
          %v411 = vld [vmem:[%s346 + $0x148] sm:$0xff]
          %v412 = vld [vmem:[%s346 + $0x150] sm:$0xff]
          %v413 = vld [vmem:[%s346 + $0x158] sm:$0xff]
          %v414 = vld [vmem:[%s346 + $0x160] sm:$0xff]
          %v415 = vld [vmem:[%s346 + $0x168] sm:$0xff]
          %v416 = vld [vmem:[%s346 + $0x170] sm:$0xff]
          %v417 = vld [vmem:[%s346 + $0x178] sm:$0xff]
          %v418 = vld [vmem:[%s346 + $0x180] sm:$0xff]
          %v419 = vld [vmem:[%s346 + $0x188] sm:$0xff]
          %v420 = vld [vmem:[%s346 + $0x190] sm:$0xff]
          %v421 = vld [vmem:[%s346 + $0x198] sm:$0xff]
          %v422 = vld [vmem:[%s346 + $0x1a0] sm:$0xff]
          %v423 = vld [vmem:[%s346 + $0x1a8] sm:$0xff]
          %v424 = vld [vmem:[%s346 + $0x1b0] sm:$0xff]
          %v425 = vld [vmem:[%s346 + $0x1b8] sm:$0xff]
          %v426 = vld [vmem:[%s346 + $0x1c0] sm:$0xff]
          %v427 = vld [vmem:[%s346 + $0x1c8] sm:$0xff]
          %v428 = vld [vmem:[%s346 + $0x1d0] sm:$0xff]
          %v429 = vld [vmem:[%s346 + $0x1d8] sm:$0xff]
          %v430 = vld [vmem:[%s346 + $0x1e0] sm:$0xff]
          %v431 = vld [vmem:[%s346 + $0x1e8] sm:$0xff]
          %v432 = vld [vmem:[%s346 + $0x1f0] sm:$0xff]
          %v433 = vld [vmem:[%s346 + $0x1f8] sm:$0xff]
          %434 = vset.pattern.permute.xlu0 0
          %435 = vperm.xlu0 %434, %v370
          %v436 = vpop.permute.xlu0 %435
          %437 = vset.pattern.permute.xlu0 0
          %438 = vperm.xlu0 %437, %v371
          %v439 = vpop.permute.xlu0 %438
          %440 = vset.pattern.permute.xlu0 0
          %441 = vperm.xlu0 %440, %v372
          %v442 = vpop.permute.xlu0 %441
          %443 = vset.pattern.permute.xlu0 0
          %444 = vperm.xlu0 %443, %v373
          %v445 = vpop.permute.xlu0 %444
          %446 = vset.pattern.permute.xlu0 0
          %447 = vperm.xlu0 %446, %v374
          %v448 = vpop.permute.xlu0 %447
          %449 = vset.pattern.permute.xlu0 0
          %450 = vperm.xlu0 %449, %v375
          %v451 = vpop.permute.xlu0 %450
          %452 = vset.pattern.permute.xlu0 0
          %453 = vperm.xlu0 %452, %v376
          %v454 = vpop.permute.xlu0 %453
          %455 = vset.pattern.permute.xlu0 0
          %456 = vperm.xlu0 %455, %v377
          %v457 = vpop.permute.xlu0 %456
          %458 = vset.pattern.permute.xlu0 0
          %459 = vperm.xlu0 %458, %v378
          %v460 = vpop.permute.xlu0 %459
          %461 = vset.pattern.permute.xlu0 0
          %462 = vperm.xlu0 %461, %v379
          %v463 = vpop.permute.xlu0 %462
          %464 = vset.pattern.permute.xlu0 0
          %465 = vperm.xlu0 %464, %v380
          %v466 = vpop.permute.xlu0 %465
          %467 = vset.pattern.permute.xlu0 0
          %468 = vperm.xlu0 %467, %v381
          %v469 = vpop.permute.xlu0 %468
          %470 = vset.pattern.permute.xlu0 0
          %471 = vperm.xlu0 %470, %v382
          %v472 = vpop.permute.xlu0 %471
          %473 = vset.pattern.permute.xlu0 0
          %474 = vperm.xlu0 %473, %v383
          %v475 = vpop.permute.xlu0 %474
          %476 = vset.pattern.permute.xlu0 0
          %477 = vperm.xlu0 %476, %v384
          %v478 = vpop.permute.xlu0 %477
          %479 = vset.pattern.permute.xlu0 0
          %480 = vperm.xlu0 %479, %v385
          %v481 = vpop.permute.xlu0 %480
          %482 = vset.pattern.permute.xlu0 0
          %483 = vperm.xlu0 %482, %v386
          %v484 = vpop.permute.xlu0 %483
          %485 = vset.pattern.permute.xlu0 0
          %486 = vperm.xlu0 %485, %v387
          %v487 = vpop.permute.xlu0 %486
          %488 = vset.pattern.permute.xlu0 0
          %489 = vperm.xlu0 %488, %v388
          %v490 = vpop.permute.xlu0 %489
          %491 = vset.pattern.permute.xlu0 0
          %492 = vperm.xlu0 %491, %v389
          %v493 = vpop.permute.xlu0 %492
          %494 = vset.pattern.permute.xlu0 0
          %495 = vperm.xlu0 %494, %v390
          %v496 = vpop.permute.xlu0 %495
          %497 = vset.pattern.permute.xlu0 0
          %498 = vperm.xlu0 %497, %v391
          %v499 = vpop.permute.xlu0 %498
          %500 = vset.pattern.permute.xlu0 0
          %501 = vperm.xlu0 %500, %v392
          %v502 = vpop.permute.xlu0 %501
          %503 = vset.pattern.permute.xlu0 0
          %504 = vperm.xlu0 %503, %v393
          %v505 = vpop.permute.xlu0 %504
          %506 = vset.pattern.permute.xlu0 0
          %507 = vperm.xlu0 %506, %v394
          %v508 = vpop.permute.xlu0 %507
          %509 = vset.pattern.permute.xlu0 0
          %510 = vperm.xlu0 %509, %v395
          %v511 = vpop.permute.xlu0 %510
          %512 = vset.pattern.permute.xlu0 0
          %513 = vperm.xlu0 %512, %v396
          %v514 = vpop.permute.xlu0 %513
          %515 = vset.pattern.permute.xlu0 0
          %516 = vperm.xlu0 %515, %v397
          %v517 = vpop.permute.xlu0 %516
          %518 = vset.pattern.permute.xlu0 0
          %519 = vperm.xlu0 %518, %v398
          %v520 = vpop.permute.xlu0 %519
          %521 = vset.pattern.permute.xlu0 0
          %522 = vperm.xlu0 %521, %v399
          %v523 = vpop.permute.xlu0 %522
          %524 = vset.pattern.permute.xlu0 0
          %525 = vperm.xlu0 %524, %v400
          %v526 = vpop.permute.xlu0 %525
          %527 = vset.pattern.permute.xlu0 0
          %528 = vperm.xlu0 %527, %v401
          %v529 = vpop.permute.xlu0 %528
          %530 = vset.pattern.permute.xlu0 0
          %531 = vperm.xlu0 %530, %v402
          %v532 = vpop.permute.xlu0 %531
          %533 = vset.pattern.permute.xlu0 0
          %534 = vperm.xlu0 %533, %v403
          %v535 = vpop.permute.xlu0 %534
          %536 = vset.pattern.permute.xlu0 0
          %537 = vperm.xlu0 %536, %v404
          %v538 = vpop.permute.xlu0 %537
          %539 = vset.pattern.permute.xlu0 0
          %540 = vperm.xlu0 %539, %v405
          %v541 = vpop.permute.xlu0 %540
          %542 = vset.pattern.permute.xlu0 0
          %543 = vperm.xlu0 %542, %v406
          %v544 = vpop.permute.xlu0 %543
          %545 = vset.pattern.permute.xlu0 0
          %546 = vperm.xlu0 %545, %v407
          %v547 = vpop.permute.xlu0 %546
          %548 = vset.pattern.permute.xlu0 0
          %549 = vperm.xlu0 %548, %v408
          %v550 = vpop.permute.xlu0 %549
          %551 = vset.pattern.permute.xlu0 0
          %552 = vperm.xlu0 %551, %v409
          %v553 = vpop.permute.xlu0 %552
          %554 = vset.pattern.permute.xlu0 0
          %555 = vperm.xlu0 %554, %v410
          %v556 = vpop.permute.xlu0 %555
          %557 = vset.pattern.permute.xlu0 0
          %558 = vperm.xlu0 %557, %v411
          %v559 = vpop.permute.xlu0 %558
          %560 = vset.pattern.permute.xlu0 0
          %561 = vperm.xlu0 %560, %v412
          %v562 = vpop.permute.xlu0 %561
          %563 = vset.pattern.permute.xlu0 0
          %564 = vperm.xlu0 %563, %v413
          %v565 = vpop.permute.xlu0 %564
          %566 = vset.pattern.permute.xlu0 0
          %567 = vperm.xlu0 %566, %v414
          %v568 = vpop.permute.xlu0 %567
          %569 = vset.pattern.permute.xlu0 0
          %570 = vperm.xlu0 %569, %v415
          %v571 = vpop.permute.xlu0 %570
          %572 = vset.pattern.permute.xlu0 0
          %573 = vperm.xlu0 %572, %v416
          %v574 = vpop.permute.xlu0 %573
          %575 = vset.pattern.permute.xlu0 0
          %576 = vperm.xlu0 %575, %v417
          %v577 = vpop.permute.xlu0 %576
          %578 = vset.pattern.permute.xlu0 0
          %579 = vperm.xlu0 %578, %v418
          %v580 = vpop.permute.xlu0 %579
          %581 = vset.pattern.permute.xlu0 0
          %582 = vperm.xlu0 %581, %v419
          %v583 = vpop.permute.xlu0 %582
          %584 = vset.pattern.permute.xlu0 0
          %585 = vperm.xlu0 %584, %v420
          %v586 = vpop.permute.xlu0 %585
          %587 = vset.pattern.permute.xlu0 0
          %588 = vperm.xlu0 %587, %v421
          %v589 = vpop.permute.xlu0 %588
          %590 = vset.pattern.permute.xlu0 0
          %591 = vperm.xlu0 %590, %v422
          %v592 = vpop.permute.xlu0 %591
          %593 = vset.pattern.permute.xlu0 0
          %594 = vperm.xlu0 %593, %v423
          %v595 = vpop.permute.xlu0 %594
          %596 = vset.pattern.permute.xlu0 0
          %597 = vperm.xlu0 %596, %v424
          %v598 = vpop.permute.xlu0 %597
          %599 = vset.pattern.permute.xlu0 0
          %600 = vperm.xlu0 %599, %v425
          %v601 = vpop.permute.xlu0 %600
          %602 = vset.pattern.permute.xlu0 0
          %603 = vperm.xlu0 %602, %v426
          %v604 = vpop.permute.xlu0 %603
          %605 = vset.pattern.permute.xlu0 0
          %606 = vperm.xlu0 %605, %v427
          %v607 = vpop.permute.xlu0 %606
          %608 = vset.pattern.permute.xlu0 0
          %609 = vperm.xlu0 %608, %v428
          %v610 = vpop.permute.xlu0 %609
          %611 = vset.pattern.permute.xlu0 0
          %612 = vperm.xlu0 %611, %v429
          %v613 = vpop.permute.xlu0 %612
          %614 = vset.pattern.permute.xlu0 0
          %615 = vperm.xlu0 %614, %v430
          %v616 = vpop.permute.xlu0 %615
          %617 = vset.pattern.permute.xlu0 0
          %618 = vperm.xlu0 %617, %v431
          %v619 = vpop.permute.xlu0 %618
          %620 = vset.pattern.permute.xlu0 0
          %621 = vperm.xlu0 %620, %v432
          %v622 = vpop.permute.xlu0 %621
          %623 = vset.pattern.permute.xlu0 0
          %624 = vperm.xlu0 %623, %v433
          %v625 = vpop.permute.xlu0 %624
          %vm626 = vcmp.eq.s32.totalorder %v436, %v365
          %vm627 = vcmp.eq.s32.totalorder %v439, %v365
          %vm628 = vcmp.eq.s32.totalorder %v442, %v365
          %vm629 = vcmp.eq.s32.totalorder %v445, %v365
          %vm630 = vcmp.eq.s32.totalorder %v448, %v365
          %vm631 = vcmp.eq.s32.totalorder %v451, %v365
          %vm632 = vcmp.eq.s32.totalorder %v454, %v365
          %vm633 = vcmp.eq.s32.totalorder %v457, %v365
          %vm634 = vcmp.eq.s32.totalorder %v460, %v365
          %vm635 = vcmp.eq.s32.totalorder %v463, %v365
          %vm636 = vcmp.eq.s32.totalorder %v466, %v365
          %vm637 = vcmp.eq.s32.totalorder %v469, %v365
          %vm638 = vcmp.eq.s32.totalorder %v472, %v365
          %vm639 = vcmp.eq.s32.totalorder %v475, %v365
          %vm640 = vcmp.eq.s32.totalorder %v478, %v365
          %vm641 = vcmp.eq.s32.totalorder %v481, %v365
          %vm642 = vcmp.eq.s32.totalorder %v484, %v365
          %vm643 = vcmp.eq.s32.totalorder %v487, %v365
          %vm644 = vcmp.eq.s32.totalorder %v490, %v365
          %vm645 = vcmp.eq.s32.totalorder %v493, %v365
          %vm646 = vcmp.eq.s32.totalorder %v496, %v365
          %vm647 = vcmp.eq.s32.totalorder %v499, %v365
          %vm648 = vcmp.eq.s32.totalorder %v502, %v365
          %vm649 = vcmp.eq.s32.totalorder %v505, %v365
          %vm650 = vcmp.eq.s32.totalorder %v508, %v365
          %vm651 = vcmp.eq.s32.totalorder %v511, %v365
          %vm652 = vcmp.eq.s32.totalorder %v514, %v365
          %vm653 = vcmp.eq.s32.totalorder %v517, %v365
          %vm654 = vcmp.eq.s32.totalorder %v520, %v365
          %vm655 = vcmp.eq.s32.totalorder %v523, %v365
          %vm656 = vcmp.eq.s32.totalorder %v526, %v365
          %vm657 = vcmp.eq.s32.totalorder %v529, %v365
          %vm658 = vcmp.eq.s32.totalorder %v532, %v365
          %vm659 = vcmp.eq.s32.totalorder %v535, %v365
          %vm660 = vcmp.eq.s32.totalorder %v538, %v365
          %vm661 = vcmp.eq.s32.totalorder %v541, %v365
          %vm662 = vcmp.eq.s32.totalorder %v544, %v365
          %vm663 = vcmp.eq.s32.totalorder %v547, %v365
          %vm664 = vcmp.eq.s32.totalorder %v550, %v365
          %vm665 = vcmp.eq.s32.totalorder %v553, %v365
          %vm666 = vcmp.eq.s32.totalorder %v556, %v365
          %vm667 = vcmp.eq.s32.totalorder %v559, %v365
          %vm668 = vcmp.eq.s32.totalorder %v562, %v365
          %vm669 = vcmp.eq.s32.totalorder %v565, %v365
          %vm670 = vcmp.eq.s32.totalorder %v568, %v365
          %vm671 = vcmp.eq.s32.totalorder %v571, %v365
          %vm672 = vcmp.eq.s32.totalorder %v574, %v365
          %vm673 = vcmp.eq.s32.totalorder %v577, %v365
          %vm674 = vcmp.eq.s32.totalorder %v580, %v365
          %vm675 = vcmp.eq.s32.totalorder %v583, %v365
          %vm676 = vcmp.eq.s32.totalorder %v586, %v365
          %vm677 = vcmp.eq.s32.totalorder %v589, %v365
          %vm678 = vcmp.eq.s32.totalorder %v592, %v365
          %vm679 = vcmp.eq.s32.totalorder %v595, %v365
          %vm680 = vcmp.eq.s32.totalorder %v598, %v365
          %vm681 = vcmp.eq.s32.totalorder %v601, %v365
          %vm682 = vcmp.eq.s32.totalorder %v604, %v365
          %vm683 = vcmp.eq.s32.totalorder %v607, %v365
          %vm684 = vcmp.eq.s32.totalorder %v610, %v365
          %vm685 = vcmp.eq.s32.totalorder %v613, %v365
          %vm686 = vcmp.eq.s32.totalorder %v616, %v365
          %vm687 = vcmp.eq.s32.totalorder %v619, %v365
          %vm688 = vcmp.eq.s32.totalorder %v622, %v365
          %vm689 = vcmp.eq.s32.totalorder %v625, %v365
          %v690 = vsel %vm626, 1, 0
          %v691 = vsel %vm627, 1, 0
          %v692 = vsel %vm628, 1, 0
          %v693 = vsel %vm629, 1, 0
          %v694 = vsel %vm630, 1, 0
          %v695 = vsel %vm631, 1, 0
          %v696 = vsel %vm632, 1, 0
          %v697 = vsel %vm633, 1, 0
          %v698 = vsel %vm634, 1, 0
          %v699 = vsel %vm635, 1, 0
          %v700 = vsel %vm636, 1, 0
          %v701 = vsel %vm637, 1, 0
          %v702 = vsel %vm638, 1, 0
          %v703 = vsel %vm639, 1, 0
          %v704 = vsel %vm640, 1, 0
          %v705 = vsel %vm641, 1, 0
          %v706 = vsel %vm642, 1, 0
          %v707 = vsel %vm643, 1, 0
          %v708 = vsel %vm644, 1, 0
          %v709 = vsel %vm645, 1, 0
          %v710 = vsel %vm646, 1, 0
          %v711 = vsel %vm647, 1, 0
          %v712 = vsel %vm648, 1, 0
          %v713 = vsel %vm649, 1, 0
          %v714 = vsel %vm650, 1, 0
          %v715 = vsel %vm651, 1, 0
          %v716 = vsel %vm652, 1, 0
          %v717 = vsel %vm653, 1, 0
          %v718 = vsel %vm654, 1, 0
          %v719 = vsel %vm655, 1, 0
          %v720 = vsel %vm656, 1, 0
          %v721 = vsel %vm657, 1, 0
          %v722 = vsel %vm658, 1, 0
          %v723 = vsel %vm659, 1, 0
          %v724 = vsel %vm660, 1, 0
          %v725 = vsel %vm661, 1, 0
          %v726 = vsel %vm662, 1, 0
          %v727 = vsel %vm663, 1, 0
          %v728 = vsel %vm664, 1, 0
          %v729 = vsel %vm665, 1, 0
          %v730 = vsel %vm666, 1, 0
          %v731 = vsel %vm667, 1, 0
          %v732 = vsel %vm668, 1, 0
          %v733 = vsel %vm669, 1, 0
          %v734 = vsel %vm670, 1, 0
          %v735 = vsel %vm671, 1, 0
          %v736 = vsel %vm672, 1, 0
          %v737 = vsel %vm673, 1, 0
          %v738 = vsel %vm674, 1, 0
          %v739 = vsel %vm675, 1, 0
          %v740 = vsel %vm676, 1, 0
          %v741 = vsel %vm677, 1, 0
          %v742 = vsel %vm678, 1, 0
          %v743 = vsel %vm679, 1, 0
          %v744 = vsel %vm680, 1, 0
          %v745 = vsel %vm681, 1, 0
          %v746 = vsel %vm682, 1, 0
          %v747 = vsel %vm683, 1, 0
          %v748 = vsel %vm684, 1, 0
          %v749 = vsel %vm685, 1, 0
          %v750 = vsel %vm686, 1, 0
          %v751 = vsel %vm687, 1, 0
          %v752 = vsel %vm688, 1, 0
          %v753 = vsel %vm689, 1, 0
          %v754 = vcvt.s32.f32 %v690
          %v755 = vcvt.s32.f32 %v691
          %v756 = vcvt.s32.f32 %v692
          %v757 = vcvt.s32.f32 %v693
          %v758 = vcvt.s32.f32 %v694
          %v759 = vcvt.s32.f32 %v695
          %v760 = vcvt.s32.f32 %v696
          %v761 = vcvt.s32.f32 %v697
          %v762 = vcvt.s32.f32 %v698
          %v763 = vcvt.s32.f32 %v699
          %v764 = vcvt.s32.f32 %v700
          %v765 = vcvt.s32.f32 %v701
          %v766 = vcvt.s32.f32 %v702
          %v767 = vcvt.s32.f32 %v703
          %v768 = vcvt.s32.f32 %v704
          %v769 = vcvt.s32.f32 %v705
          %v770 = vcvt.s32.f32 %v706
          %v771 = vcvt.s32.f32 %v707
          %v772 = vcvt.s32.f32 %v708
          %v773 = vcvt.s32.f32 %v709
          %v774 = vcvt.s32.f32 %v710
          %v775 = vcvt.s32.f32 %v711
          %v776 = vcvt.s32.f32 %v712
          %v777 = vcvt.s32.f32 %v713
          %v778 = vcvt.s32.f32 %v714
          %v779 = vcvt.s32.f32 %v715
          %v780 = vcvt.s32.f32 %v716
          %v781 = vcvt.s32.f32 %v717
          %v782 = vcvt.s32.f32 %v718
          %v783 = vcvt.s32.f32 %v719
          %v784 = vcvt.s32.f32 %v720
          %v785 = vcvt.s32.f32 %v721
          %v786 = vcvt.s32.f32 %v722
          %v787 = vcvt.s32.f32 %v723
          %v788 = vcvt.s32.f32 %v724
          %v789 = vcvt.s32.f32 %v725
          %v790 = vcvt.s32.f32 %v726
          %v791 = vcvt.s32.f32 %v727
          %v792 = vcvt.s32.f32 %v728
          %v793 = vcvt.s32.f32 %v729
          %v794 = vcvt.s32.f32 %v730
          %v795 = vcvt.s32.f32 %v731
          %v796 = vcvt.s32.f32 %v732
          %v797 = vcvt.s32.f32 %v733
          %v798 = vcvt.s32.f32 %v734
          %v799 = vcvt.s32.f32 %v735
          %v800 = vcvt.s32.f32 %v736
          %v801 = vcvt.s32.f32 %v737
          %v802 = vcvt.s32.f32 %v738
          %v803 = vcvt.s32.f32 %v739
          %v804 = vcvt.s32.f32 %v740
          %v805 = vcvt.s32.f32 %v741
          %v806 = vcvt.s32.f32 %v742
          %v807 = vcvt.s32.f32 %v743
          %v808 = vcvt.s32.f32 %v744
          %v809 = vcvt.s32.f32 %v745
          %v810 = vcvt.s32.f32 %v746
          %v811 = vcvt.s32.f32 %v747
          %v812 = vcvt.s32.f32 %v748
          %v813 = vcvt.s32.f32 %v749
          %v814 = vcvt.s32.f32 %v750
          %v815 = vcvt.s32.f32 %v751
          %v816 = vcvt.s32.f32 %v752
          %v817 = vcvt.s32.f32 %v753
          %vm818 = vcmask 261120
          %819 = vst.msk [vmem:[#allocation3] sm:$0xff] %vm818, %v754
          %820 = vst.msk [vmem:[#allocation3 + $0x8] sm:$0xff] %vm818, %v755
          %821 = vst.msk [vmem:[#allocation3 + $0x10] sm:$0xff] %vm818, %v756
          %822 = vst.msk [vmem:[#allocation3 + $0x18] sm:$0xff] %vm818, %v757
          %823 = vst.msk [vmem:[#allocation3 + $0x20] sm:$0xff] %vm818, %v758
          %824 = vst.msk [vmem:[#allocation3 + $0x28] sm:$0xff] %vm818, %v759
          %825 = vst.msk [vmem:[#allocation3 + $0x30] sm:$0xff] %vm818, %v760
          %826 = vst.msk [vmem:[#allocation3 + $0x38] sm:$0xff] %vm818, %v761
          %827 = vst.msk [vmem:[#allocation3 + $0x40] sm:$0xff] %vm818, %v762
          %828 = vst.msk [vmem:[#allocation3 + $0x48] sm:$0xff] %vm818, %v763
          %829 = vst.msk [vmem:[#allocation3 + $0x50] sm:$0xff] %vm818, %v764
          %830 = vst.msk [vmem:[#allocation3 + $0x58] sm:$0xff] %vm818, %v765
          %831 = vst.msk [vmem:[#allocation3 + $0x60] sm:$0xff] %vm818, %v766
          %832 = vst.msk [vmem:[#allocation3 + $0x68] sm:$0xff] %vm818, %v767
          %833 = vst.msk [vmem:[#allocation3 + $0x70] sm:$0xff] %vm818, %v768
          %834 = vst.msk [vmem:[#allocation3 + $0x78] sm:$0xff] %vm818, %v769
          %835 = vst.msk [vmem:[#allocation3 + $0x80] sm:$0xff] %vm818, %v770
          %836 = vst.msk [vmem:[#allocation3 + $0x88] sm:$0xff] %vm818, %v771
          %837 = vst.msk [vmem:[#allocation3 + $0x90] sm:$0xff] %vm818, %v772
          %838 = vst.msk [vmem:[#allocation3 + $0x98] sm:$0xff] %vm818, %v773
          %839 = vst.msk [vmem:[#allocation3 + $0xa0] sm:$0xff] %vm818, %v774
          %840 = vst.msk [vmem:[#allocation3 + $0xa8] sm:$0xff] %vm818, %v775
          %841 = vst.msk [vmem:[#allocation3 + $0xb0] sm:$0xff] %vm818, %v776
          %842 = vst.msk [vmem:[#allocation3 + $0xb8] sm:$0xff] %vm818, %v777
          %843 = vst.msk [vmem:[#allocation3 + $0xc0] sm:$0xff] %vm818, %v778
          %844 = vst.msk [vmem:[#allocation3 + $0xc8] sm:$0xff] %vm818, %v779
          %845 = vst.msk [vmem:[#allocation3 + $0xd0] sm:$0xff] %vm818, %v780
          %846 = vst.msk [vmem:[#allocation3 + $0xd8] sm:$0xff] %vm818, %v781
          %847 = vst.msk [vmem:[#allocation3 + $0xe0] sm:$0xff] %vm818, %v782
          %848 = vst.msk [vmem:[#allocation3 + $0xe8] sm:$0xff] %vm818, %v783
          %849 = vst.msk [vmem:[#allocation3 + $0xf0] sm:$0xff] %vm818, %v784
          %850 = vst.msk [vmem:[#allocation3 + $0xf8] sm:$0xff] %vm818, %v785
          %851 = vst.msk [vmem:[#allocation3 + $0x100] sm:$0xff] %vm818, %v786
          %852 = vst.msk [vmem:[#allocation3 + $0x108] sm:$0xff] %vm818, %v787
          %853 = vst.msk [vmem:[#allocation3 + $0x110] sm:$0xff] %vm818, %v788
          %854 = vst.msk [vmem:[#allocation3 + $0x118] sm:$0xff] %vm818, %v789
          %855 = vst.msk [vmem:[#allocation3 + $0x120] sm:$0xff] %vm818, %v790
          %856 = vst.msk [vmem:[#allocation3 + $0x128] sm:$0xff] %vm818, %v791
          %857 = vst.msk [vmem:[#allocation3 + $0x130] sm:$0xff] %vm818, %v792
          %858 = vst.msk [vmem:[#allocation3 + $0x138] sm:$0xff] %vm818, %v793
          %859 = vst.msk [vmem:[#allocation3 + $0x140] sm:$0xff] %vm818, %v794
          %860 = vst.msk [vmem:[#allocation3 + $0x148] sm:$0xff] %vm818, %v795
          %861 = vst.msk [vmem:[#allocation3 + $0x150] sm:$0xff] %vm818, %v796
          %862 = vst.msk [vmem:[#allocation3 + $0x158] sm:$0xff] %vm818, %v797
          %863 = vst.msk [vmem:[#allocation3 + $0x160] sm:$0xff] %vm818, %v798
          %864 = vst.msk [vmem:[#allocation3 + $0x168] sm:$0xff] %vm818, %v799
          %865 = vst.msk [vmem:[#allocation3 + $0x170] sm:$0xff] %vm818, %v800
          %866 = vst.msk [vmem:[#allocation3 + $0x178] sm:$0xff] %vm818, %v801
          %867 = vst.msk [vmem:[#allocation3 + $0x180] sm:$0xff] %vm818, %v802
          %868 = vst.msk [vmem:[#allocation3 + $0x188] sm:$0xff] %vm818, %v803
          %869 = vst.msk [vmem:[#allocation3 + $0x190] sm:$0xff] %vm818, %v804
          %870 = vst.msk [vmem:[#allocation3 + $0x198] sm:$0xff] %vm818, %v805
          %871 = vst.msk [vmem:[#allocation3 + $0x1a0] sm:$0xff] %vm818, %v806
          %872 = vst.msk [vmem:[#allocation3 + $0x1a8] sm:$0xff] %vm818, %v807
          %873 = vst.msk [vmem:[#allocation3 + $0x1b0] sm:$0xff] %vm818, %v808
          %874 = vst.msk [vmem:[#allocation3 + $0x1b8] sm:$0xff] %vm818, %v809
          %875 = vst.msk [vmem:[#allocation3 + $0x1c0] sm:$0xff] %vm818, %v810
          %876 = vst.msk [vmem:[#allocation3 + $0x1c8] sm:$0xff] %vm818, %v811
          %877 = vst.msk [vmem:[#allocation3 + $0x1d0] sm:$0xff] %vm818, %v812
          %878 = vst.msk [vmem:[#allocation3 + $0x1d8] sm:$0xff] %vm818, %v813
          %879 = vst.msk [vmem:[#allocation3 + $0x1e0] sm:$0xff] %vm818, %v814
          %880 = vst.msk [vmem:[#allocation3 + $0x1e8] sm:$0xff] %vm818, %v815
          %881 = vst.msk [vmem:[#allocation3 + $0x1f0] sm:$0xff] %vm818, %v816
          %882 = vst.msk [vmem:[#allocation3 + $0x1f8] sm:$0xff] %vm818, %v817
        $region82: #{_ctc_loss_fwd.1} parent=73 // pred_fallthru
          _
        %v883 = vld [vmem:[%s298] sm:$0xff]
        %v884 = vld [vmem:[%s298 + $0x8] sm:$0xff]
        %v885 = vld [vmem:[%s298 + $0x10] sm:$0xff]
        %v886 = vld [vmem:[%s298 + $0x18] sm:$0xff]
        %vm887 = vcmask 261120
        %v888 = vsel %vm887, %v883, -inf
        %889 = vmax.xlane.f32.xlu0 %v888
        %v890 = vpop.xlane.xlu0 %889
        %v891 = vsel %vm887, %v884, -inf
        %892 = vmax.xlane.f32.xlu0 %v891
        %v893 = vpop.xlane.xlu0 %892
        %v894 = vsel %vm887, %v885, -inf
        %895 = vmax.xlane.f32.xlu0 %v894
        %v896 = vpop.xlane.xlu0 %895
        %v897 = vsel %vm887, %v886, -inf
        %898 = vmax.xlane.f32.xlu0 %v897
        %v899 = vpop.xlane.xlu0 %898
        %v900 = vsub.f32 %v883, %v890
        %v901 = vsub.f32 %v884, %v893
        %v902 = vsub.f32 %v885, %v896
        %v903 = vsub.f32 %v886, %v899
        %v904 = vmul.f32 %v900, 1.442695
        %v905 = vpow.pop %v904
        %v906 = vmul.f32 %v901, 1.442695
        %v907 = vpow.pop %v906
        %v908 = vmul.f32 %v902, 1.442695
        %v909 = vpow.pop %v908
        %v910 = vmul.f32 %v903, 1.442695
        %v911 = vpow.pop %v910
        %v912 = vsel %vm887, %v905, 0.0
        %913 = vadd.xlane.f32.xlu0 %v912
        %v914 = vpop.xlane.xlu0 %913
        %v915 = vsel %vm887, %v907, 0.0
        %916 = vadd.xlane.f32.xlu0 %v915
        %v917 = vpop.xlane.xlu0 %916
        %v918 = vsel %vm887, %v909, 0.0
        %919 = vadd.xlane.f32.xlu0 %v918
        %v920 = vpop.xlane.xlu0 %919
        %v921 = vsel %vm887, %v911, 0.0
        %922 = vadd.xlane.f32.xlu0 %v921
        %v923 = vpop.xlane.xlu0 %922
        %v924 = vlog2.pop %v914
        %v925 = vmul.f32 %v924, 0.6931472
        %v926 = vlog2.pop %v917
        %v927 = vmul.f32 %v926, 0.6931472
        %v928 = vlog2.pop %v920
        %v929 = vmul.f32 %v928, 0.6931472
        %v930 = vlog2.pop %v923
        %v931 = vmul.f32 %v930, 0.6931472
        %v932 = vadd.f32 %v890, %v925
        %v933 = vadd.f32 %v893, %v927
        %v934 = vadd.f32 %v896, %v929
        %v935 = vadd.f32 %v899, %v931
        %v936 = vld [vmem:[#allocation3] sm:$0xff]
        %v937 = vld [vmem:[#allocation3 + $0x8] sm:$0xff]
        %v938 = vld [vmem:[#allocation3 + $0x10] sm:$0xff]
        %v939 = vld [vmem:[#allocation3 + $0x18] sm:$0xff]
        %v940 = vld [vmem:[#allocation3 + $0x20] sm:$0xff]
        %v941 = vld [vmem:[#allocation3 + $0x28] sm:$0xff]
        %v942 = vld [vmem:[#allocation3 + $0x30] sm:$0xff]
        %v943 = vld [vmem:[#allocation3 + $0x38] sm:$0xff]
        %v944 = vld [vmem:[#allocation3 + $0x40] sm:$0xff]
        %v945 = vld [vmem:[#allocation3 + $0x48] sm:$0xff]
        %v946 = vld [vmem:[#allocation3 + $0x50] sm:$0xff]
        %v947 = vld [vmem:[#allocation3 + $0x58] sm:$0xff]
        %v948 = vld [vmem:[#allocation3 + $0x60] sm:$0xff]
        %v949 = vld [vmem:[#allocation3 + $0x68] sm:$0xff]
        %v950 = vld [vmem:[#allocation3 + $0x70] sm:$0xff]
        %v951 = vld [vmem:[#allocation3 + $0x78] sm:$0xff]
        %v952 = vld [vmem:[#allocation3 + $0x80] sm:$0xff]
        %v953 = vld [vmem:[#allocation3 + $0x88] sm:$0xff]
        %v954 = vld [vmem:[#allocation3 + $0x90] sm:$0xff]
        %v955 = vld [vmem:[#allocation3 + $0x98] sm:$0xff]
        %v956 = vld [vmem:[#allocation3 + $0xa0] sm:$0xff]
        %v957 = vld [vmem:[#allocation3 + $0xa8] sm:$0xff]
        %v958 = vld [vmem:[#allocation3 + $0xb0] sm:$0xff]
        %v959 = vld [vmem:[#allocation3 + $0xb8] sm:$0xff]
        %v960 = vld [vmem:[#allocation3 + $0xc0] sm:$0xff]
        %v961 = vld [vmem:[#allocation3 + $0xc8] sm:$0xff]
        %v962 = vld [vmem:[#allocation3 + $0xd0] sm:$0xff]
        %v963 = vld [vmem:[#allocation3 + $0xd8] sm:$0xff]
        %v964 = vld [vmem:[#allocation3 + $0xe0] sm:$0xff]
        %v965 = vld [vmem:[#allocation3 + $0xe8] sm:$0xff]
        %v966 = vld [vmem:[#allocation3 + $0xf0] sm:$0xff]
        %v967 = vld [vmem:[#allocation3 + $0xf8] sm:$0xff]
        %v968 = vld [vmem:[#allocation3 + $0x100] sm:$0xff]
        %v969 = vld [vmem:[#allocation3 + $0x108] sm:$0xff]
        %v970 = vld [vmem:[#allocation3 + $0x110] sm:$0xff]
        %v971 = vld [vmem:[#allocation3 + $0x118] sm:$0xff]
        %v972 = vld [vmem:[#allocation3 + $0x120] sm:$0xff]
        %v973 = vld [vmem:[#allocation3 + $0x128] sm:$0xff]
        %v974 = vld [vmem:[#allocation3 + $0x130] sm:$0xff]
        %v975 = vld [vmem:[#allocation3 + $0x138] sm:$0xff]
        %v976 = vld [vmem:[#allocation3 + $0x140] sm:$0xff]
        %v977 = vld [vmem:[#allocation3 + $0x148] sm:$0xff]
        %v978 = vld [vmem:[#allocation3 + $0x150] sm:$0xff]
        %v979 = vld [vmem:[#allocation3 + $0x158] sm:$0xff]
        %v980 = vld [vmem:[#allocation3 + $0x160] sm:$0xff]
        %v981 = vld [vmem:[#allocation3 + $0x168] sm:$0xff]
        %v982 = vld [vmem:[#allocation3 + $0x170] sm:$0xff]
        %v983 = vld [vmem:[#allocation3 + $0x178] sm:$0xff]
        %v984 = vld [vmem:[#allocation3 + $0x180] sm:$0xff]
        %v985 = vld [vmem:[#allocation3 + $0x188] sm:$0xff]
        %v986 = vld [vmem:[#allocation3 + $0x190] sm:$0xff]
        %v987 = vld [vmem:[#allocation3 + $0x198] sm:$0xff]
        %v988 = vld [vmem:[#allocation3 + $0x1a0] sm:$0xff]
        %v989 = vld [vmem:[#allocation3 + $0x1a8] sm:$0xff]
        %v990 = vld [vmem:[#allocation3 + $0x1b0] sm:$0xff]
        %v991 = vld [vmem:[#allocation3 + $0x1b8] sm:$0xff]
        %v992 = vld [vmem:[#allocation3 + $0x1c0] sm:$0xff]
        %v993 = vld [vmem:[#allocation3 + $0x1c8] sm:$0xff]
        %v994 = vld [vmem:[#allocation3 + $0x1d0] sm:$0xff]
        %v995 = vld [vmem:[#allocation3 + $0x1d8] sm:$0xff]
        %v996 = vld [vmem:[#allocation3 + $0x1e0] sm:$0xff]
        %v997 = vld [vmem:[#allocation3 + $0x1e8] sm:$0xff]
        %v998 = vld [vmem:[#allocation3 + $0x1f0] sm:$0xff]
        %v999 = vld [vmem:[#allocation3 + $0x1f8] sm:$0xff]
        %v1001 = vsel %vm887, %v883, 0
        %v1004 = vsel %vm887, %v936, 0
        %v1007 = vsel %vm887, %v937, 0
        %v1010 = vsel %vm887, %v938, 0
        %v1013 = vsel %vm887, %v939, 0
        %v1016 = vsel %vm887, %v940, 0
        %v1019 = vsel %vm887, %v941, 0
        %v1022 = vsel %vm887, %v942, 0
        %v1025 = vsel %vm887, %v943, 0
        %v1028 = vsel %vm887, %v944, 0
        %v1031 = vsel %vm887, %v945, 0
        %v1034 = vsel %vm887, %v946, 0
        %v1037 = vsel %vm887, %v947, 0
        %v1040 = vsel %vm887, %v948, 0
        %v1043 = vsel %vm887, %v949, 0
        %v1046 = vsel %vm887, %v950, 0
        %v1049 = vsel %vm887, %v951, 0
        %1051 = vmatprep.subr.mxu0 0.0
        %1052 = vmatpush1.xpose.msra.mxu0 %v1049
        %1053 = vmatprep.subr.mxu0 0.0
        %1054 = vmatpush1.xpose.msra.mxu0 %v1046
        %1055 = vmatprep.subr.mxu0 0.0
        %1056 = vmatpush1.xpose.msra.mxu0 %v1043
        %1057 = vmatprep.subr.mxu0 0.0
        %1058 = vmatpush1.xpose.msra.mxu0 %v1040
        %1059 = vmatprep.subr.mxu0 0.0
        %1060 = vmatpush1.xpose.msra.mxu0 %v1037
        %1061 = vmatprep.subr.mxu0 0.0
        %1062 = vmatpush1.xpose.msra.mxu0 %v1034
        %1063 = vmatprep.subr.mxu0 0.0
        %1064 = vmatpush1.xpose.msra.mxu0 %v1031
        %1065 = vmatprep.subr.mxu0 0.0
        %1066 = vmatpush1.xpose.msra.mxu0 %v1028
        %1067 = vmatprep.subr.mxu0 0.0
        %1068 = vmatpush1.xpose.msra.mxu0 %v1025
        %1069 = vmatprep.subr.mxu0 0.0
        %1070 = vmatpush1.xpose.msra.mxu0 %v1022
        %1071 = vmatprep.subr.mxu0 0.0
        %1072 = vmatpush1.xpose.msra.mxu0 %v1019
        %1073 = vmatprep.subr.mxu0 0.0
        %1074 = vmatpush1.xpose.msra.mxu0 %v1016
        %1075 = vmatprep.subr.mxu0 0.0
        %1076 = vmatpush1.xpose.msra.mxu0 %v1013
        %1077 = vmatprep.subr.mxu0 0.0
        %1078 = vmatpush1.xpose.msra.mxu0 %v1010
        %1079 = vmatprep.subr.mxu0 0.0
        %1080 = vmatpush1.xpose.msra.mxu0 %v1007
        %1081 = vmatprep.subr.mxu0 0.0
        %1082 = vmatpush1.xpose.msra.mxu0 %v1004
        %1083 = vmatprep.subr.mxu0 0.0
        %1084 = vmatpush2.xpose.msra.mxu0 0.0
        %1085 = vmatprep.subr.mxu0 0.0
        %1086 = vmatpush2.xpose.msra.mxu0 0.0
        %1087 = vmatprep.subr.mxu0 0.0
        %1088 = vmatpush2.xpose.msra.mxu0 0.0
        %1089 = vmatprep.subr.mxu0 0.0
        %1090 = vmatpush2.xpose.msra.mxu0 0.0
        %1091 = vmatprep.subr.mxu0 0.0
        %1092 = vmatpush2.xpose.msra.mxu0 0.0
        %1093 = vmatprep.subr.mxu0 0.0
        %1094 = vmatpush2.xpose.msra.mxu0 0.0
        %1095 = vmatprep.subr.mxu0 0.0
        %1096 = vmatpush2.xpose.msra.mxu0 0.0
        %1097 = vmatprep.subr.mxu0 0.0
        %1098 = vmatpush2.xpose.msra.mxu0 0.0
        %1099 = vmatprep.subr.mxu0 0.0
        %1100 = vmatpush2.xpose.msra.mxu0 0.0
        %1101 = vmatprep.subr.mxu0 0.0
        %1102 = vmatpush2.xpose.msra.mxu0 0.0
        %1103 = vmatprep.subr.mxu0 0.0
        %1104 = vmatpush2.xpose.msra.mxu0 0.0
        %1105 = vmatprep.subr.mxu0 0.0
        %1106 = vmatpush2.xpose.msra.mxu0 0.0
        %1107 = vmatprep.subr.mxu0 0.0
        %1108 = vmatpush2.xpose.msra.mxu0 0.0
        %1109 = vmatprep.subr.mxu0 0.0
        %1110 = vmatpush2.xpose.msra.mxu0 0.0
        %1111 = vmatprep.subr.mxu0 0.0
        %1112 = vmatpush2.xpose.msra.mxu0 0.0
        %1113 = vmatprep.subr.mxu0 0.0
        %1114 = vmatpush2.xpose.msra.mxu0 0.0
        %1115 = vmatprep.mubr.f32.mxu0 0.0
        %1116 = vmatmul.mubr.f32.gmra.mxu0 %v1001
        %v1117 = vpop.f32.mrf.mxu0
        %v1118 = vadd.f32 0.0, %v1117
        %v1119 = vpop.f32.mrf.mxu0
        %1120 = vdwg.mxu0
        %v1122 = vsel %vm887, %v884, 0
        %v1125 = vsel %vm887, %v952, 0
        %v1128 = vsel %vm887, %v953, 0
        %v1131 = vsel %vm887, %v954, 0
        %v1134 = vsel %vm887, %v955, 0
        %v1137 = vsel %vm887, %v956, 0
        %v1140 = vsel %vm887, %v957, 0
        %v1143 = vsel %vm887, %v958, 0
        %v1146 = vsel %vm887, %v959, 0
        %v1149 = vsel %vm887, %v960, 0
        %v1152 = vsel %vm887, %v961, 0
        %v1155 = vsel %vm887, %v962, 0
        %v1158 = vsel %vm887, %v963, 0
        %v1161 = vsel %vm887, %v964, 0
        %v1164 = vsel %vm887, %v965, 0
        %v1167 = vsel %vm887, %v966, 0
        %v1170 = vsel %vm887, %v967, 0
        %1172 = vmatprep.subr.mxu0 0.0
        %1173 = vmatpush1.xpose.msra.mxu0 %v1170
        %1174 = vmatprep.subr.mxu0 0.0
        %1175 = vmatpush1.xpose.msra.mxu0 %v1167
        %1176 = vmatprep.subr.mxu0 0.0
        %1177 = vmatpush1.xpose.msra.mxu0 %v1164
        %1178 = vmatprep.subr.mxu0 0.0
        %1179 = vmatpush1.xpose.msra.mxu0 %v1161
        %1180 = vmatprep.subr.mxu0 0.0
        %1181 = vmatpush1.xpose.msra.mxu0 %v1158
        %1182 = vmatprep.subr.mxu0 0.0
        %1183 = vmatpush1.xpose.msra.mxu0 %v1155
        %1184 = vmatprep.subr.mxu0 0.0
        %1185 = vmatpush1.xpose.msra.mxu0 %v1152
        %1186 = vmatprep.subr.mxu0 0.0
        %1187 = vmatpush1.xpose.msra.mxu0 %v1149
        %1188 = vmatprep.subr.mxu0 0.0
        %1189 = vmatpush1.xpose.msra.mxu0 %v1146
        %1190 = vmatprep.subr.mxu0 0.0
        %1191 = vmatpush1.xpose.msra.mxu0 %v1143
        %1192 = vmatprep.subr.mxu0 0.0
        %1193 = vmatpush1.xpose.msra.mxu0 %v1140
        %1194 = vmatprep.subr.mxu0 0.0
        %1195 = vmatpush1.xpose.msra.mxu0 %v1137
        %1196 = vmatprep.subr.mxu0 0.0
        %1197 = vmatpush1.xpose.msra.mxu0 %v1134
        %1198 = vmatprep.subr.mxu0 0.0
        %1199 = vmatpush1.xpose.msra.mxu0 %v1131
        %1200 = vmatprep.subr.mxu0 0.0
        %1201 = vmatpush1.xpose.msra.mxu0 %v1128
        %1202 = vmatprep.subr.mxu0 0.0
        %1203 = vmatpush1.xpose.msra.mxu0 %v1125
        %1204 = vmatprep.subr.mxu0 0.0
        %1205 = vmatpush2.xpose.msra.mxu0 0.0
        %1206 = vmatprep.subr.mxu0 0.0
        %1207 = vmatpush2.xpose.msra.mxu0 0.0
        %1208 = vmatprep.subr.mxu0 0.0
        %1209 = vmatpush2.xpose.msra.mxu0 0.0
        %1210 = vmatprep.subr.mxu0 0.0
        %1211 = vmatpush2.xpose.msra.mxu0 0.0
        %1212 = vmatprep.subr.mxu0 0.0
        %1213 = vmatpush2.xpose.msra.mxu0 0.0
        %1214 = vmatprep.subr.mxu0 0.0
        %1215 = vmatpush2.xpose.msra.mxu0 0.0
        %1216 = vmatprep.subr.mxu0 0.0
        %1217 = vmatpush2.xpose.msra.mxu0 0.0
        %1218 = vmatprep.subr.mxu0 0.0
        %1219 = vmatpush2.xpose.msra.mxu0 0.0
        %1220 = vmatprep.subr.mxu0 0.0
        %1221 = vmatpush2.xpose.msra.mxu0 0.0
        %1222 = vmatprep.subr.mxu0 0.0
        %1223 = vmatpush2.xpose.msra.mxu0 0.0
        %1224 = vmatprep.subr.mxu0 0.0
        %1225 = vmatpush2.xpose.msra.mxu0 0.0
        %1226 = vmatprep.subr.mxu0 0.0
        %1227 = vmatpush2.xpose.msra.mxu0 0.0
        %1228 = vmatprep.subr.mxu0 0.0
        %1229 = vmatpush2.xpose.msra.mxu0 0.0
        %1230 = vmatprep.subr.mxu0 0.0
        %1231 = vmatpush2.xpose.msra.mxu0 0.0
        %1232 = vmatprep.subr.mxu0 0.0
        %1233 = vmatpush2.xpose.msra.mxu0 0.0
        %1234 = vmatprep.subr.mxu0 0.0
        %1235 = vmatpush2.xpose.msra.mxu0 0.0
        %1236 = vmatprep.mubr.f32.mxu0 0.0
        %1237 = vmatmul.mubr.f32.gmra.mxu0 %v1122
        %v1238 = vpop.f32.mrf.mxu0
        %v1239 = vadd.f32 0.0, %v1238
        %v1240 = vpop.f32.mrf.mxu0
        %1241 = vdwg.mxu0
        %v1243 = vsel %vm887, %v885, 0
        %v1246 = vsel %vm887, %v968, 0
        %v1249 = vsel %vm887, %v969, 0
        %v1252 = vsel %vm887, %v970, 0
        %v1255 = vsel %vm887, %v971, 0
        %v1258 = vsel %vm887, %v972, 0
        %v1261 = vsel %vm887, %v973, 0
        %v1264 = vsel %vm887, %v974, 0
        %v1267 = vsel %vm887, %v975, 0
        %v1270 = vsel %vm887, %v976, 0
        %v1273 = vsel %vm887, %v977, 0
        %v1276 = vsel %vm887, %v978, 0
        %v1279 = vsel %vm887, %v979, 0
        %v1282 = vsel %vm887, %v980, 0
        %v1285 = vsel %vm887, %v981, 0
        %v1288 = vsel %vm887, %v982, 0
        %v1291 = vsel %vm887, %v983, 0
        %1293 = vmatprep.subr.mxu0 0.0
        %1294 = vmatpush1.xpose.msra.mxu0 %v1291
        %1295 = vmatprep.subr.mxu0 0.0
        %1296 = vmatpush1.xpose.msra.mxu0 %v1288
        %1297 = vmatprep.subr.mxu0 0.0
        %1298 = vmatpush1.xpose.msra.mxu0 %v1285
        %1299 = vmatprep.subr.mxu0 0.0
        %1300 = vmatpush1.xpose.msra.mxu0 %v1282
        %1301 = vmatprep.subr.mxu0 0.0
        %1302 = vmatpush1.xpose.msra.mxu0 %v1279
        %1303 = vmatprep.subr.mxu0 0.0
        %1304 = vmatpush1.xpose.msra.mxu0 %v1276
        %1305 = vmatprep.subr.mxu0 0.0
        %1306 = vmatpush1.xpose.msra.mxu0 %v1273
        %1307 = vmatprep.subr.mxu0 0.0
        %1308 = vmatpush1.xpose.msra.mxu0 %v1270
        %1309 = vmatprep.subr.mxu0 0.0
        %1310 = vmatpush1.xpose.msra.mxu0 %v1267
        %1311 = vmatprep.subr.mxu0 0.0
        %1312 = vmatpush1.xpose.msra.mxu0 %v1264
        %1313 = vmatprep.subr.mxu0 0.0
        %1314 = vmatpush1.xpose.msra.mxu0 %v1261
        %1315 = vmatprep.subr.mxu0 0.0
        %1316 = vmatpush1.xpose.msra.mxu0 %v1258
        %1317 = vmatprep.subr.mxu0 0.0
        %1318 = vmatpush1.xpose.msra.mxu0 %v1255
        %1319 = vmatprep.subr.mxu0 0.0
        %1320 = vmatpush1.xpose.msra.mxu0 %v1252
        %1321 = vmatprep.subr.mxu0 0.0
        %1322 = vmatpush1.xpose.msra.mxu0 %v1249
        %1323 = vmatprep.subr.mxu0 0.0
        %1324 = vmatpush1.xpose.msra.mxu0 %v1246
        %1325 = vmatprep.subr.mxu0 0.0
        %1326 = vmatpush2.xpose.msra.mxu0 0.0
        %1327 = vmatprep.subr.mxu0 0.0
        %1328 = vmatpush2.xpose.msra.mxu0 0.0
        %1329 = vmatprep.subr.mxu0 0.0
        %1330 = vmatpush2.xpose.msra.mxu0 0.0
        %1331 = vmatprep.subr.mxu0 0.0
        %1332 = vmatpush2.xpose.msra.mxu0 0.0
        %1333 = vmatprep.subr.mxu0 0.0
        %1334 = vmatpush2.xpose.msra.mxu0 0.0
        %1335 = vmatprep.subr.mxu0 0.0
        %1336 = vmatpush2.xpose.msra.mxu0 0.0
        %1337 = vmatprep.subr.mxu0 0.0
        %1338 = vmatpush2.xpose.msra.mxu0 0.0
        %1339 = vmatprep.subr.mxu0 0.0
        %1340 = vmatpush2.xpose.msra.mxu0 0.0
        %1341 = vmatprep.subr.mxu0 0.0
        %1342 = vmatpush2.xpose.msra.mxu0 0.0
        %1343 = vmatprep.subr.mxu0 0.0
        %1344 = vmatpush2.xpose.msra.mxu0 0.0
        %1345 = vmatprep.subr.mxu0 0.0
        %1346 = vmatpush2.xpose.msra.mxu0 0.0
        %1347 = vmatprep.subr.mxu0 0.0
        %1348 = vmatpush2.xpose.msra.mxu0 0.0
        %1349 = vmatprep.subr.mxu0 0.0
        %1350 = vmatpush2.xpose.msra.mxu0 0.0
        %1351 = vmatprep.subr.mxu0 0.0
        %1352 = vmatpush2.xpose.msra.mxu0 0.0
        %1353 = vmatprep.subr.mxu0 0.0
        %1354 = vmatpush2.xpose.msra.mxu0 0.0
        %1355 = vmatprep.subr.mxu0 0.0
        %1356 = vmatpush2.xpose.msra.mxu0 0.0
        %1357 = vmatprep.mubr.f32.mxu0 0.0
        %1358 = vmatmul.mubr.f32.gmra.mxu0 %v1243
        %v1359 = vpop.f32.mrf.mxu0
        %v1360 = vadd.f32 0.0, %v1359
        %v1361 = vpop.f32.mrf.mxu0
        %1362 = vdwg.mxu0
        %v1364 = vsel %vm887, %v886, 0
        %v1367 = vsel %vm887, %v984, 0
        %v1370 = vsel %vm887, %v985, 0
        %v1373 = vsel %vm887, %v986, 0
        %v1376 = vsel %vm887, %v987, 0
        %v1379 = vsel %vm887, %v988, 0
        %v1382 = vsel %vm887, %v989, 0
        %v1385 = vsel %vm887, %v990, 0
        %v1388 = vsel %vm887, %v991, 0
        %v1391 = vsel %vm887, %v992, 0
        %v1394 = vsel %vm887, %v993, 0
        %v1397 = vsel %vm887, %v994, 0
        %v1400 = vsel %vm887, %v995, 0
        %v1403 = vsel %vm887, %v996, 0
        %v1406 = vsel %vm887, %v997, 0
        %v1409 = vsel %vm887, %v998, 0
        %v1412 = vsel %vm887, %v999, 0
        %1414 = vmatprep.subr.mxu0 0.0
        %1415 = vmatpush1.xpose.msra.mxu0 %v1412
        %1416 = vmatprep.subr.mxu0 0.0
        %1417 = vmatpush1.xpose.msra.mxu0 %v1409
        %1418 = vmatprep.subr.mxu0 0.0
        %1419 = vmatpush1.xpose.msra.mxu0 %v1406
        %1420 = vmatprep.subr.mxu0 0.0
        %1421 = vmatpush1.xpose.msra.mxu0 %v1403
        %1422 = vmatprep.subr.mxu0 0.0
        %1423 = vmatpush1.xpose.msra.mxu0 %v1400
        %1424 = vmatprep.subr.mxu0 0.0
        %1425 = vmatpush1.xpose.msra.mxu0 %v1397
        %1426 = vmatprep.subr.mxu0 0.0
        %1427 = vmatpush1.xpose.msra.mxu0 %v1394
        %1428 = vmatprep.subr.mxu0 0.0
        %1429 = vmatpush1.xpose.msra.mxu0 %v1391
        %1430 = vmatprep.subr.mxu0 0.0
        %1431 = vmatpush1.xpose.msra.mxu0 %v1388
        %1432 = vmatprep.subr.mxu0 0.0
        %1433 = vmatpush1.xpose.msra.mxu0 %v1385
        %1434 = vmatprep.subr.mxu0 0.0
        %1435 = vmatpush1.xpose.msra.mxu0 %v1382
        %1436 = vmatprep.subr.mxu0 0.0
        %1437 = vmatpush1.xpose.msra.mxu0 %v1379
        %1438 = vmatprep.subr.mxu0 0.0
        %1439 = vmatpush1.xpose.msra.mxu0 %v1376
        %1440 = vmatprep.subr.mxu0 0.0
        %1441 = vmatpush1.xpose.msra.mxu0 %v1373
        %1442 = vmatprep.subr.mxu0 0.0
        %1443 = vmatpush1.xpose.msra.mxu0 %v1370
        %1444 = vmatprep.subr.mxu0 0.0
        %1445 = vmatpush1.xpose.msra.mxu0 %v1367
        %1446 = vmatprep.subr.mxu0 0.0
        %1447 = vmatpush2.xpose.msra.mxu0 0.0
        %1448 = vmatprep.subr.mxu0 0.0
        %1449 = vmatpush2.xpose.msra.mxu0 0.0
        %1450 = vmatprep.subr.mxu0 0.0
        %1451 = vmatpush2.xpose.msra.mxu0 0.0
        %1452 = vmatprep.subr.mxu0 0.0
        %1453 = vmatpush2.xpose.msra.mxu0 0.0
        %1454 = vmatprep.subr.mxu0 0.0
        %1455 = vmatpush2.xpose.msra.mxu0 0.0
        %1456 = vmatprep.subr.mxu0 0.0
        %1457 = vmatpush2.xpose.msra.mxu0 0.0
        %1458 = vmatprep.subr.mxu0 0.0
        %1459 = vmatpush2.xpose.msra.mxu0 0.0
        %1460 = vmatprep.subr.mxu0 0.0
        %1461 = vmatpush2.xpose.msra.mxu0 0.0
        %1462 = vmatprep.subr.mxu0 0.0
        %1463 = vmatpush2.xpose.msra.mxu0 0.0
        %1464 = vmatprep.subr.mxu0 0.0
        %1465 = vmatpush2.xpose.msra.mxu0 0.0
        %1466 = vmatprep.subr.mxu0 0.0
        %1467 = vmatpush2.xpose.msra.mxu0 0.0
        %1468 = vmatprep.subr.mxu0 0.0
        %1469 = vmatpush2.xpose.msra.mxu0 0.0
        %1470 = vmatprep.subr.mxu0 0.0
        %1471 = vmatpush2.xpose.msra.mxu0 0.0
        %1472 = vmatprep.subr.mxu0 0.0
        %1473 = vmatpush2.xpose.msra.mxu0 0.0
        %1474 = vmatprep.subr.mxu0 0.0
        %1475 = vmatpush2.xpose.msra.mxu0 0.0
        %1476 = vmatprep.subr.mxu0 0.0
        %1477 = vmatpush2.xpose.msra.mxu0 0.0
        %1478 = vmatprep.mubr.f32.mxu0 0.0
        %1479 = vmatmul.mubr.f32.gmra.mxu0 %v1364
        %v1480 = vpop.f32.mrf.mxu0
        %v1481 = vadd.f32 0.0, %v1480
        %v1482 = vpop.f32.mrf.mxu0
        %1483 = vdwg.mxu0
        %v1484 = vsub.f32 %v1118, %v932
        %v1485 = vsub.f32 %v1239, %v933
        %v1486 = vsub.f32 %v1360, %v934
        %v1487 = vsub.f32 %v1481, %v935
        // Predicated region
        $region83: #{_ctc_loss_fwd.1} parent=73 // pred_check
          %p1488 = pneg %p366
        $region84: #{_ctc_loss_fwd.1} parent=73 // pred_check_branch
          %1490 = sbr.rel (%p1488) target = $region86
        $region85: #{_ctc_loss_fwd.1} parent=73 // pred_region
          %vm1491 = vcmp.lt.s32.totalorder %v365, 2
          %v1496 = vrot.slane %v1485, 7
          %vm1497 = vcmask 1041409
          %v1498 = vsel %vm1497, %v1496, %v1484
          %v1499 = vrot.slane %v1486, 6
          %vm1500 = vcmask 1042434
          %v1501 = vsel %vm1500, %v1499, %v1498
          %v1502 = vrot.slane %v1487, 5
          %vm1503 = vcmask 1043459
          %v1504 = vsel %vm1503, %v1502, %v1501
          %v1506 = vsel %vm1491, %v1504, -1e+30
          %1507 = vst [vmem:[#allocation2] sm:$0xf] %v1506
        $region86: #{_ctc_loss_fwd.1} parent=73 // pred_fallthru
          _
        %v1508 = vld [vmem:[%s355] sm:$0xf]
        %vm1509 = vcmp.ge.s32.totalorder %v365, 1
        %v1510 = vld [vmem:[%s351] sm:$0xf]
        %vm1511 = vcmp.gt.s32.totalorder %v1510, 0
        %s1512 = smul.u32 %s21, 8
        %v1513 = vld [vmem:[#allocation2] sm:$0xf]
        %1514 = vrot.lane.b32.xlu0 %v1513, 1
        %v1515 = vpop.permute.xlu0 %1514
        %v1516 = vsel %vm1509, %v1515, -1e+30
        %1517 = vrot.lane.b32.xlu0 %v1513, 2
        %v1518 = vpop.permute.xlu0 %1517
        %v1519 = vsel %vm1511, %v1518, -1e+30
        %v1520 = vmax.f32 %v1516, %v1519
        %v1521 = vmax.f32 %v1513, %v1520
        %v1522 = vsub.f32 %v1513, %v1521
        %v1523 = vmul.f32 %v1522, 1.442695
        %v1524 = vpow.pop %v1523
        %v1525 = vsub.f32 %v1516, %v1521
        %v1526 = vmul.f32 %v1525, 1.442695
        %v1527 = vpow.pop %v1526
        %v1528 = vadd.f32 %v1524, %v1527
        %v1529 = vsub.f32 %v1519, %v1521
        %v1530 = vmul.f32 %v1529, 1.442695
        %v1531 = vpow.pop %v1530
        %v1532 = vadd.f32 %v1528, %v1531
        %v1533 = vlog2.pop %v1532
        %v1534 = vmul.f32 %v1533, 0.6931472
        %v1535 = vadd.f32 %v1521, %v1534
        %v1540 = vrot.slane %v1485, 7
        %vm1541 = vcmask 1041409
        %v1542 = vsel %vm1541, %v1540, %v1484
        %v1543 = vrot.slane %v1486, 6
        %vm1544 = vcmask 1042434
        %v1545 = vsel %vm1544, %v1543, %v1542
        %v1546 = vrot.slane %v1487, 5
        %vm1547 = vcmask 1043459
        %v1548 = vsel %vm1547, %v1546, %v1545
        %v1550 = vadd.f32 %v1535, %v1548
        %v1551 = vmax.f32 %v1550, -1e+30
        %v1552 = vstv %s1512
        %vm1553 = vcmp.lt.s32.totalorder %v1552, %v1508
        %p1554 = scmp.ge.s32.totalorder %s1512, 1
        %s1555 = scalar_select %p1554, 1, 0
        %v1556 = vstv %s1555
        %vm1557 = vcmp.eq.s32.totalorder %v1556, 1
        %vm1558 = vmand %vm1557, %vm1553
        %v1559 = vsel %vm1558, 1, 0
        %1560 = vset.pattern.permute.xlu0 0
        %1561 = vperm.xlu0 %1560, %v1559
        %v1562 = vpop.permute.xlu0 %1561
        %vm1563 = vcmp.eq.s32.totalorder %v1562, 1
        %v1564 = vsel %vm1563, %v1551, %v1513
        %s1565 = sadd.s32 %s1512, 1
        %1566 = vrot.lane.b32.xlu0 %v1564, 1
        %v1567 = vpop.permute.xlu0 %1566
        %v1568 = vsel %vm1509, %v1567, -1e+30
        %1569 = vrot.lane.b32.xlu0 %v1564, 2
        %v1570 = vpop.permute.xlu0 %1569
        %v1571 = vsel %vm1511, %v1570, -1e+30
        %v1572 = vmax.f32 %v1568, %v1571
        %v1573 = vmax.f32 %v1564, %v1572
        %v1574 = vsub.f32 %v1564, %v1573
        %v1575 = vmul.f32 %v1574, 1.442695
        %v1576 = vpow.pop %v1575
        %v1577 = vsub.f32 %v1568, %v1573
        %v1578 = vmul.f32 %v1577, 1.442695
        %v1579 = vpow.pop %v1578
        %v1580 = vadd.f32 %v1576, %v1579
        %v1581 = vsub.f32 %v1571, %v1573
        %v1582 = vmul.f32 %v1581, 1.442695
        %v1583 = vpow.pop %v1582
        %v1584 = vadd.f32 %v1580, %v1583
        %v1585 = vlog2.pop %v1584
        %v1586 = vmul.f32 %v1585, 0.6931472
        %v1587 = vadd.f32 %v1573, %v1586
        %v1588 = vrot.slane %v1484, 1
        %v1589 = vsel %vm1541, %v1485, %v1588
        %v1590 = vrot.slane %v1486, 7
        %v1591 = vsel %vm1544, %v1590, %v1589
        %v1592 = vrot.slane %v1487, 6
        %v1593 = vsel %vm1547, %v1592, %v1591
        %v1595 = vadd.f32 %v1587, %v1593
        %v1596 = vmax.f32 %v1595, -1e+30
        %v1597 = vstv %s1565
        %vm1598 = vcmp.lt.s32.totalorder %v1597, %v1508
        %v1599 = vsel %vm1598, 1, 0
        %1600 = vset.pattern.permute.xlu0 0
        %1601 = vperm.xlu0 %1600, %v1599
        %v1602 = vpop.permute.xlu0 %1601
        %vm1603 = vcmp.eq.s32.totalorder %v1602, 1
        %v1604 = vsel %vm1603, %v1596, %v1564
        %s1605 = sadd.s32 %s1512, 2
        %1606 = vrot.lane.b32.xlu0 %v1604, 1
        %v1607 = vpop.permute.xlu0 %1606
        %v1608 = vsel %vm1509, %v1607, -1e+30
        %1609 = vrot.lane.b32.xlu0 %v1604, 2
        %v1610 = vpop.permute.xlu0 %1609
        %v1611 = vsel %vm1511, %v1610, -1e+30
        %v1612 = vmax.f32 %v1608, %v1611
        %v1613 = vmax.f32 %v1604, %v1612
        %v1614 = vsub.f32 %v1604, %v1613
        %v1615 = vmul.f32 %v1614, 1.442695
        %v1616 = vpow.pop %v1615
        %v1617 = vsub.f32 %v1608, %v1613
        %v1618 = vmul.f32 %v1617, 1.442695
        %v1619 = vpow.pop %v1618
        %v1620 = vadd.f32 %v1616, %v1619
        %v1621 = vsub.f32 %v1611, %v1613
        %v1622 = vmul.f32 %v1621, 1.442695
        %v1623 = vpow.pop %v1622
        %v1624 = vadd.f32 %v1620, %v1623
        %v1625 = vlog2.pop %v1624
        %v1626 = vmul.f32 %v1625, 0.6931472
        %v1627 = vadd.f32 %v1613, %v1626
        %v1628 = vrot.slane %v1484, 2
        %v1629 = vrot.slane %v1485, 1
        %v1630 = vsel %vm1541, %v1629, %v1628
        %v1631 = vsel %vm1544, %v1486, %v1630
        %v1632 = vrot.slane %v1487, 7
        %v1633 = vsel %vm1547, %v1632, %v1631
        %v1635 = vadd.f32 %v1627, %v1633
        %v1636 = vmax.f32 %v1635, -1e+30
        %v1637 = vstv %s1605
        %vm1638 = vcmp.lt.s32.totalorder %v1637, %v1508
        %v1639 = vsel %vm1638, 1, 0
        %1640 = vset.pattern.permute.xlu0 0
        %1641 = vperm.xlu0 %1640, %v1639
        %v1642 = vpop.permute.xlu0 %1641
        %vm1643 = vcmp.eq.s32.totalorder %v1642, 1
        %v1644 = vsel %vm1643, %v1636, %v1604
        %s1645 = sadd.s32 %s1512, 3
        %1646 = vrot.lane.b32.xlu0 %v1644, 1
        %v1647 = vpop.permute.xlu0 %1646
        %v1648 = vsel %vm1509, %v1647, -1e+30
        %1649 = vrot.lane.b32.xlu0 %v1644, 2
        %v1650 = vpop.permute.xlu0 %1649
        %v1651 = vsel %vm1511, %v1650, -1e+30
        %v1652 = vmax.f32 %v1648, %v1651
        %v1653 = vmax.f32 %v1644, %v1652
        %v1654 = vsub.f32 %v1644, %v1653
        %v1655 = vmul.f32 %v1654, 1.442695
        %v1656 = vpow.pop %v1655
        %v1657 = vsub.f32 %v1648, %v1653
        %v1658 = vmul.f32 %v1657, 1.442695
        %v1659 = vpow.pop %v1658
        %v1660 = vadd.f32 %v1656, %v1659
        %v1661 = vsub.f32 %v1651, %v1653
        %v1662 = vmul.f32 %v1661, 1.442695
        %v1663 = vpow.pop %v1662
        %v1664 = vadd.f32 %v1660, %v1663
        %v1665 = vlog2.pop %v1664
        %v1666 = vmul.f32 %v1665, 0.6931472
        %v1667 = vadd.f32 %v1653, %v1666
        %v1668 = vrot.slane %v1484, 3
        %v1669 = vrot.slane %v1485, 2
        %v1670 = vsel %vm1541, %v1669, %v1668
        %v1671 = vrot.slane %v1486, 1
        %v1672 = vsel %vm1544, %v1671, %v1670
        %v1673 = vsel %vm1547, %v1487, %v1672
        %v1675 = vadd.f32 %v1667, %v1673
        %v1676 = vmax.f32 %v1675, -1e+30
        %v1677 = vstv %s1645
        %vm1678 = vcmp.lt.s32.totalorder %v1677, %v1508
        %v1679 = vsel %vm1678, 1, 0
        %1680 = vset.pattern.permute.xlu0 0
        %1681 = vperm.xlu0 %1680, %v1679
        %v1682 = vpop.permute.xlu0 %1681
        %vm1683 = vcmp.eq.s32.totalorder %v1682, 1
        %v1684 = vsel %vm1683, %v1676, %v1644
        %s1685 = sadd.s32 %s1512, 4
        %1686 = vrot.lane.b32.xlu0 %v1684, 1
        %v1687 = vpop.permute.xlu0 %1686
        %v1688 = vsel %vm1509, %v1687, -1e+30
        %1689 = vrot.lane.b32.xlu0 %v1684, 2
        %v1690 = vpop.permute.xlu0 %1689
        %v1691 = vsel %vm1511, %v1690, -1e+30
        %v1692 = vmax.f32 %v1688, %v1691
        %v1693 = vmax.f32 %v1684, %v1692
        %v1694 = vsub.f32 %v1684, %v1693
        %v1695 = vmul.f32 %v1694, 1.442695
        %v1696 = vpow.pop %v1695
        %v1697 = vsub.f32 %v1688, %v1693
        %v1698 = vmul.f32 %v1697, 1.442695
        %v1699 = vpow.pop %v1698
        %v1700 = vadd.f32 %v1696, %v1699
        %v1701 = vsub.f32 %v1691, %v1693
        %v1702 = vmul.f32 %v1701, 1.442695
        %v1703 = vpow.pop %v1702
        %v1704 = vadd.f32 %v1700, %v1703
        %v1705 = vlog2.pop %v1704
        %v1706 = vmul.f32 %v1705, 0.6931472
        %v1707 = vadd.f32 %v1693, %v1706
        %v1708 = vrot.slane %v1484, 4
        %v1709 = vrot.slane %v1485, 3
        %v1710 = vsel %vm1541, %v1709, %v1708
        %v1711 = vrot.slane %v1486, 2
        %v1712 = vsel %vm1544, %v1711, %v1710
        %v1713 = vrot.slane %v1487, 1
        %v1714 = vsel %vm1547, %v1713, %v1712
        %v1716 = vadd.f32 %v1707, %v1714
        %v1717 = vmax.f32 %v1716, -1e+30
        %v1718 = vstv %s1685
        %vm1719 = vcmp.lt.s32.totalorder %v1718, %v1508
        %v1720 = vsel %vm1719, 1, 0
        %1721 = vset.pattern.permute.xlu0 0
        %1722 = vperm.xlu0 %1721, %v1720
        %v1723 = vpop.permute.xlu0 %1722
        %vm1724 = vcmp.eq.s32.totalorder %v1723, 1
        %v1725 = vsel %vm1724, %v1717, %v1684
        %s1726 = sadd.s32 %s1512, 5
        %1727 = vrot.lane.b32.xlu0 %v1725, 1
        %v1728 = vpop.permute.xlu0 %1727
        %v1729 = vsel %vm1509, %v1728, -1e+30
        %1730 = vrot.lane.b32.xlu0 %v1725, 2
        %v1731 = vpop.permute.xlu0 %1730
        %v1732 = vsel %vm1511, %v1731, -1e+30
        %v1733 = vmax.f32 %v1729, %v1732
        %v1734 = vmax.f32 %v1725, %v1733
        %v1735 = vsub.f32 %v1725, %v1734
        %v1736 = vmul.f32 %v1735, 1.442695
        %v1737 = vpow.pop %v1736
        %v1738 = vsub.f32 %v1729, %v1734
        %v1739 = vmul.f32 %v1738, 1.442695
        %v1740 = vpow.pop %v1739
        %v1741 = vadd.f32 %v1737, %v1740
        %v1742 = vsub.f32 %v1732, %v1734
        %v1743 = vmul.f32 %v1742, 1.442695
        %v1744 = vpow.pop %v1743
        %v1745 = vadd.f32 %v1741, %v1744
        %v1746 = vlog2.pop %v1745
        %v1747 = vmul.f32 %v1746, 0.6931472
        %v1748 = vadd.f32 %v1734, %v1747
        %v1749 = vrot.slane %v1484, 5
        %v1750 = vrot.slane %v1485, 4
        %v1751 = vsel %vm1541, %v1750, %v1749
        %v1752 = vrot.slane %v1486, 3
        %v1753 = vsel %vm1544, %v1752, %v1751
        %v1754 = vrot.slane %v1487, 2
        %v1755 = vsel %vm1547, %v1754, %v1753
        %v1757 = vadd.f32 %v1748, %v1755
        %v1758 = vmax.f32 %v1757, -1e+30
        %v1759 = vstv %s1726
        %vm1760 = vcmp.lt.s32.totalorder %v1759, %v1508
        %v1761 = vsel %vm1760, 1, 0
        %1762 = vset.pattern.permute.xlu0 0
        %1763 = vperm.xlu0 %1762, %v1761
        %v1764 = vpop.permute.xlu0 %1763
        %vm1765 = vcmp.eq.s32.totalorder %v1764, 1
        %v1766 = vsel %vm1765, %v1758, %v1725
        %s1767 = sadd.s32 %s1512, 6
        %1768 = vrot.lane.b32.xlu0 %v1766, 1
        %v1769 = vpop.permute.xlu0 %1768
        %v1770 = vsel %vm1509, %v1769, -1e+30
        %1771 = vrot.lane.b32.xlu0 %v1766, 2
        %v1772 = vpop.permute.xlu0 %1771
        %v1773 = vsel %vm1511, %v1772, -1e+30
        %v1774 = vmax.f32 %v1770, %v1773
        %v1775 = vmax.f32 %v1766, %v1774
        %v1776 = vsub.f32 %v1766, %v1775
        %v1777 = vmul.f32 %v1776, 1.442695
        %v1778 = vpow.pop %v1777
        %v1779 = vsub.f32 %v1770, %v1775
        %v1780 = vmul.f32 %v1779, 1.442695
        %v1781 = vpow.pop %v1780
        %v1782 = vadd.f32 %v1778, %v1781
        %v1783 = vsub.f32 %v1773, %v1775
        %v1784 = vmul.f32 %v1783, 1.442695
        %v1785 = vpow.pop %v1784
        %v1786 = vadd.f32 %v1782, %v1785
        %v1787 = vlog2.pop %v1786
        %v1788 = vmul.f32 %v1787, 0.6931472
        %v1789 = vadd.f32 %v1775, %v1788
        %v1790 = vrot.slane %v1484, 6
        %v1791 = vrot.slane %v1485, 5
        %v1792 = vsel %vm1541, %v1791, %v1790
        %v1793 = vrot.slane %v1486, 4
        %v1794 = vsel %vm1544, %v1793, %v1792
        %v1795 = vrot.slane %v1487, 3
        %v1796 = vsel %vm1547, %v1795, %v1794
        %v1798 = vadd.f32 %v1789, %v1796
        %v1799 = vmax.f32 %v1798, -1e+30
        %v1800 = vstv %s1767
        %vm1801 = vcmp.lt.s32.totalorder %v1800, %v1508
        %v1802 = vsel %vm1801, 1, 0
        %1803 = vset.pattern.permute.xlu0 0
        %1804 = vperm.xlu0 %1803, %v1802
        %v1805 = vpop.permute.xlu0 %1804
        %vm1806 = vcmp.eq.s32.totalorder %v1805, 1
        %v1807 = vsel %vm1806, %v1799, %v1766
        %s1808 = sadd.s32 %s1512, 7
        %1809 = vrot.lane.b32.xlu0 %v1807, 1
        %v1810 = vpop.permute.xlu0 %1809
        %v1811 = vsel %vm1509, %v1810, -1e+30
        %1812 = vrot.lane.b32.xlu0 %v1807, 2
        %v1813 = vpop.permute.xlu0 %1812
        %v1814 = vsel %vm1511, %v1813, -1e+30
        %v1815 = vmax.f32 %v1811, %v1814
        %v1816 = vmax.f32 %v1807, %v1815
        %v1817 = vsub.f32 %v1807, %v1816
        %v1818 = vmul.f32 %v1817, 1.442695
        %v1819 = vpow.pop %v1818
        %v1820 = vsub.f32 %v1811, %v1816
        %v1821 = vmul.f32 %v1820, 1.442695
        %v1822 = vpow.pop %v1821
        %v1823 = vadd.f32 %v1819, %v1822
        %v1824 = vsub.f32 %v1814, %v1816
        %v1825 = vmul.f32 %v1824, 1.442695
        %v1826 = vpow.pop %v1825
        %v1827 = vadd.f32 %v1823, %v1826
        %v1828 = vlog2.pop %v1827
        %v1829 = vmul.f32 %v1828, 0.6931472
        %v1830 = vadd.f32 %v1816, %v1829
        %v1831 = vrot.slane %v1484, 7
        %v1832 = vrot.slane %v1485, 6
        %v1833 = vsel %vm1541, %v1832, %v1831
        %v1834 = vrot.slane %v1486, 5
        %v1835 = vsel %vm1544, %v1834, %v1833
        %v1836 = vrot.slane %v1487, 4
        %v1837 = vsel %vm1547, %v1836, %v1835
        %v1839 = vadd.f32 %v1830, %v1837
        %v1840 = vmax.f32 %v1839, -1e+30
        %v1841 = vstv %s1808
        %vm1842 = vcmp.lt.s32.totalorder %v1841, %v1508
        %v1843 = vsel %vm1842, 1, 0
        %1844 = vset.pattern.permute.xlu0 0
        %1845 = vperm.xlu0 %1844, %v1843
        %v1846 = vpop.permute.xlu0 %1845
        %vm1847 = vcmp.eq.s32.totalorder %v1846, 1
        %v1848 = vsel %vm1847, %v1840, %v1807
        %1849 = vst [vmem:[#allocation2] sm:$0xf] %v1848
        %p1850 = scmp.eq.s32.totalorder %s21, 3
        // Predicated region
        $region87: #{_ctc_loss_fwd.1} parent=73 // pred_check
          %p1851 = pneg %p1850
        $region88: #{_ctc_loss_fwd.1} parent=73 // pred_check_branch
          %1853 = sbr.rel (%p1851) target = $region90
        $region89: #{_ctc_loss_fwd.1} parent=73 // pred_region
          %v1854 = vld [vmem:[%s359] sm:$0xf]
          %v1855 = vmul.u32 %v1854, 2
          %1856 = vset.pattern.permute.xlu0 0
          %1857 = vperm.xlu0 %1856, %v1855
          %v1858 = vpop.permute.xlu0 %1857
          %vm1859 = vcmp.eq.s32.totalorder %v365, %v1858
          %v1860 = vsel %vm1859, %v1848, -1e+30
          %vm1861 = vcmask 1043456
          %v1862 = vsel %vm1861, %v1860, -inf
          %1863 = vmax.xlane.f32.xlu0 %v1862
          %v1864 = vpop.xlane.xlu0 %1863
          %v1865 = vsub.s32 %v1855, 1
          %1866 = vset.pattern.permute.xlu0 0
          %1867 = vperm.xlu0 %1866, %v1865
          %v1868 = vpop.permute.xlu0 %1867
          %vm1869 = vcmp.eq.s32.totalorder %v365, %v1868
          %v1870 = vsel %vm1869, %v1848, -1e+30
          %v1871 = vsel %vm1861, %v1870, -inf
          %1872 = vmax.xlane.f32.xlu0 %v1871
          %v1873 = vpop.xlane.xlu0 %1872
          %v1874 = vmax.f32 %v1864, %v1873
          %v1875 = vsub.f32 %v1864, %v1874
          %v1876 = vmul.f32 %v1875, 1.442695
          %v1877 = vpow.pop %v1876
          %v1878 = vsub.f32 %v1873, %v1874
          %v1879 = vmul.f32 %v1878, 1.442695
          %v1880 = vpow.pop %v1879
          %v1881 = vadd.f32 %v1877, %v1880
          %v1882 = vlog2.pop %v1881
          %v1883 = vmul.f32 %v1882, 0.6931472
          %v1884 = vadd.f32 %v1874, %v1883
          %v1885 = vsub.f32 0.0, %v1884
          %vm1886 = vcmask 3072
          %1887 = vst.msk [vmem:[%s363] sm:$0xf] %vm1886, %v1885
        $region90: #{_ctc_loss_fwd.1} parent=73 // pred_fallthru
          _
        %p1888 = scmp.lt.s32.totalorder %s20, 0
        %s1889 = scalar_select %p1888, %s20, 0
        %s1890 = smul.addr %s1889, 4
        %s1891 = scalar_lea.vmem %s5, %s1890
        // Predicated region
        $region91: #{_ctc_loss_fwd.1} parent=73 // pred_check
          %p1892 = pneg %p178
        $region92: #{_ctc_loss_fwd.1} parent=73 // pred_check_branch
          %1894 = sbr.rel (%p1892) target = $region94
        $region93: #{_ctc_loss_fwd.1} parent=73 // pred_region
          _
        $region94: #{_ctc_loss_fwd.1} parent=73 // pred_fallthru
          _
        // Predicated region
        $region95: #{_ctc_loss_fwd.1} parent=73 // pred_check
          %p1895 = pneg %p178
        $region96: #{_ctc_loss_fwd.1} parent=73 // pred_check_branch
          %1897 = sbr.rel (%p1895) target = $region98
        $region97: #{_ctc_loss_fwd.1} parent=73 // pred_region
          %p1898 = scmp.lt.s32.totalorder %s20, 0
          %s1899 = scalar_select %p1898, %s20, 0
          %s1900 = smul.addr %s1899, 4
          %s1901 = scalar_lea.vmem %s5, %s1900
        $region98: #{_ctc_loss_fwd.1} parent=73 // pred_fallthru
          _
      $region74: #{_ctc_loss_fwd.1} parent=5 // pred_fallthru
        _
      %p1902 = scmp.le.s32.totalorder 2, %s11
      // Predicated region
      $region99: #{_ctc_loss_fwd.1} parent=5 // pred_check
        %p1903 = pneg %p1902
      $region100: #{_ctc_loss_fwd.1} parent=5 // pred_check_branch
        %1905 = sbr.rel (%p1903) target = $region102
      $region101: #{_ctc_loss_fwd.1} parent=5 // pred_region
        %s1906 = ssub.s32 %s11, 2
      $region102: #{_ctc_loss_fwd.1} parent=5 // pred_fallthru
        _
    $region6: #{_ctc_loss_fwd.1} parent=1 // loop_footer
      %s15 = sadd.s32 1, %s11
    $region7: #{_ctc_loss_fwd.1} parent=1 // loop_footer_branch
      %10 = sbr.rel target = $region3
    $region8: #{_ctc_loss_fwd.1} parent=1 // loop_exit
      _

</llo_original>
